<compile_context>
chip_gen: v7x
topology: tpu7x:2x2x1
jax: 0.10.0
libtpu: 0.0.40
codegen_flags: <defaults>
</compile_context>

<pallas_src>
import math

import jax
import jax.numpy as jnp
import numpy as np
from jax import lax
from jax.experimental import pallas as pl
from jax.experimental.pallas import tpu as pltpu

# --- problem sizes (small, consistent with the module) ---
B = 2            # batch
S_DEC = 8        # decoder sequence length
S_ENC = 8        # encoder sequence length
D_MODEL = 32     # model dim
FFN_HIDDEN = 64  # ffn hidden dim
N_HEAD = 4
D_K = D_MODEL // N_HEAD
LN_EPS = 1e-12
MASK_FILL = -1000000000.0

# derived / slab layout constants
R_DEC = B * S_DEC                 # folded decoder rows
R_ENC = B * S_ENC                 # folded encoder rows
HD = N_HEAD * D_MODEL             # 128: one lane-block per packed per-head weight
WF1_R0 = 0                        # w_small rows  0:32  cols 0:64   -> wf1
WF2_R0 = D_MODEL                  # w_small rows 32:96  cols 0:32   -> wf2
VEC_R0 = D_MODEL + FFN_HIDDEN     # w_small rows 96:104             -> bias / LN rows
SMALL_ROWS = VEC_R0 + 8           # 104 (multiple of 8)
SMALL_COLS = 128


# ----------------------- in-kernel helpers -----------------------
def _layernorm(x, alpha, bias):
    # torch: alpha*(x-mean)/(std+eps)+bias, unbiased std.  eps is negligible vs
    # var~O(1), so rsqrt(var+eps) on the EUP is numerically equivalent.
    d = x.shape[-1]
    mean = jnp.mean(x, axis=-1, keepdims=True)
    diff = x - mean
    var = jnp.sum(diff * diff, axis=-1, keepdims=True) * (1.0 / (d - 1))
    inv_std = lax.rsqrt(var + LN_EPS)
    return alpha * diff * inv_std + bias


def _attention(a_all, x_kv, vw_all, bias):
    # a_all : (Rq, H*D)  = x_q  @ [ (wq_h wk_h^T)/sqrt(d_k) ]_h   (folded Q-side)
    # x_kv  : (Rk, D)    raw key/value-side activations
    # vw_all: (Rk, H*D)  = x_kv @ [ wv_h wo_h ]_h                 (folded V*Wo)
    # bias  : (Rq, Rk)   additive mask bias (0 or -1e9)
    out = None
    for h in range(N_HEAD):                      # fully unrolled, H = 4
        lo = h * D_MODEL
        s = lax.dot_general(a_all[:, lo:lo + D_MODEL], x_kv,
                            (((1,), (1,)), ((), ())),
                            preferred_element_type=jnp.float32) + bias
        s = s - jnp.max(s, axis=-1, keepdims=True)
        p = jnp.exp(s)
        p = p * pl.reciprocal(jnp.sum(p, axis=-1, keepdims=True), approx=True)
        pv = jnp.dot(p, vw_all[:, lo:lo + D_MODEL],
                     preferred_element_type=jnp.float32)
        out = pv if out is None else out + pv
    return out                                   # (Rq, D), w_o already folded in


# ----------------------- the Pallas kernel -----------------------
def decoder_block_kernel(xcat_ref, bias_ref, wbig_ref, wsm_ref, out_ref):
    xcat = xcat_ref[...]                          # (R_DEC + R_ENC, D) f32
    dec = xcat[0:R_DEC, :]
    enc = xcat[R_DEC:R_DEC + R_ENC, :]

    trg_bias = bias_ref[0:R_DEC, 0:R_DEC]         # additive, precomputed outside
    src_bias = bias_ref[R_DEC:2 * R_DEC, 0:R_ENC]

    # One wide MXU push for every projection of both attentions.
    proj = jnp.dot(xcat, wbig_ref[...], preferred_element_type=jnp.float32)  # (.,4*HD)
    a1 = proj[0:R_DEC, 0 * HD:1 * HD]                    # self-attn folded Q side
    vw1 = proj[0:R_DEC, 1 * HD:2 * HD]                   # self-attn folded V*Wo
    a2 = proj[0:R_DEC, 2 * HD:3 * HD]                    # cross-attn folded Q side (raw dec)
    vw2 = proj[R_DEC:R_DEC + R_ENC, 3 * HD:4 * HD]       # cross-attn folded V*Wo (enc)

    vec = wsm_ref[VEC_R0:VEC_R0 + 8, :]                  # one (8,128) param block
    bf1 = vec[0:1, 0:FFN_HIDDEN]
    bf2 = vec[1:2, 0:D_MODEL]
    ln1_a, ln1_b = vec[2:3, 0:D_MODEL], vec[3:4, 0:D_MODEL]
    ln2_a, ln2_b = vec[4:5, 0:D_MODEL], vec[5:6, 0:D_MODEL]
    ln3_a, ln3_b = vec[6:7, 0:D_MODEL], vec[7:8, 0:D_MODEL]

    # --- self attention + residual + LN1 (dropout == identity) ---
    x = _attention(a1, dec, vw1, trg_bias)
    x = _layernorm(x + dec, ln1_a, ln1_b)

    # --- cross attention (query projected from raw dec, as in the reference) ---
    resid = x
    x = _attention(a2, enc, vw2, src_bias)
    x = _layernorm(x + resid, ln2_a, ln2_b)

    # --- feed forward + residual + LN3 ---
    resid = x
    h = jnp.dot(x, wsm_ref[WF1_R0:WF1_R0 + D_MODEL, 0:FFN_HIDDEN],
                preferred_element_type=jnp.float32) + bf1
    h = jnp.maximum(h, 0.0)
    x = jnp.dot(h, wsm_ref[WF2_R0:WF2_R0 + FFN_HIDDEN, 0:D_MODEL],
                preferred_element_type=jnp.float32) + bf2
    x = _layernorm(x + resid, ln3_a, ln3_b)

    out_ref[...] = x.astype(out_ref.dtype)


# ----------------------- one-time packing (NOT in the hot path) -----------------------
def pack_params(p):
    """Fold per-head Wq·Wk^T/sqrt(dk) and Wv·Wo, pack everything into 2 slabs."""
    hp = lax.Precision.HIGHEST
    scale = 1.0 / math.sqrt(D_K)
    qk1, vo1, qk2, vo2 = [], [], [], []
    for h in range(N_HEAD):
        sl = slice(h * D_K, (h + 1) * D_K)
        qk1.append(jnp.matmul(p["wq1"][:, sl], p["wk1"][:, sl].T, precision=hp) * scale)
        vo1.append(jnp.matmul(p["wv1"][:, sl], p["wo1"][sl, :], precision=hp))
        qk2.append(jnp.matmul(p["wq2"][:, sl], p["wk2"][:, sl].T, precision=hp) * scale)
        vo2.append(jnp.matmul(p["wv2"][:, sl], p["wo2"][sl, :], precision=hp))
    w_big = jnp.concatenate(
        [jnp.concatenate(qk1, axis=1), jnp.concatenate(vo1, axis=1),
         jnp.concatenate(qk2, axis=1), jnp.concatenate(vo2, axis=1)], axis=1)  # (D, 4*HD)

    small = jnp.zeros((SMALL_ROWS, SMALL_COLS), jnp.float32)
    small = small.at[WF1_R0:WF1_R0 + D_MODEL, 0:FFN_HIDDEN].set(p["wf1"])
    small = small.at[WF2_R0:WF2_R0 + FFN_HIDDEN, 0:D_MODEL].set(p["wf2"])
    small = small.at[VEC_R0 + 0, 0:FFN_HIDDEN].set(p["bf1"][0])
    small = small.at[VEC_R0 + 1, 0:D_MODEL].set(p["bf2"][0])
    small = small.at[VEC_R0 + 2, 0:D_MODEL].set(p["a1"][0])
    small = small.at[VEC_R0 + 3, 0:D_MODEL].set(p["g1"][0])
    small = small.at[VEC_R0 + 4, 0:D_MODEL].set(p["a2"][0])
    small = small.at[VEC_R0 + 5, 0:D_MODEL].set(p["g2"][0])
    small = small.at[VEC_R0 + 6, 0:D_MODEL].set(p["a3"][0])
    small = small.at[VEC_R0 + 7, 0:D_MODEL].set(p["g3"][0])
    return w_big, small


def _block_diag_bias(m):
    # m: (B, Sq, Sk) 0/1 mask -> (B*Sq, B*Sk) additive bias; off-diagonal blocks
    # get -1e9 so folded batches never attend to each other.
    bm, sq, sk = m.shape
    out = jnp.full((bm * sq, bm * sk), MASK_FILL, jnp.float32)
    for b in range(bm):
        blk = jnp.where(m[b] == 0, MASK_FILL, 0.0).astype(jnp.float32)
        out = out.at[b * sq:(b + 1) * sq, b * sk:(b + 1) * sk].set(blk)
    return out


def pack_masks(trg_mask, src_mask):
    trg_bd = _block_diag_bias(trg_mask)          # (R_DEC, R_DEC)
    src_bd = _block_diag_bias(src_mask)          # (R_DEC, R_ENC)
    kmax = max(trg_bd.shape[1], src_bd.shape[1])

    def pad(x):
        return jnp.pad(x, ((0, 0), (0, kmax - x.shape[1])), constant_values=MASK_FILL)

    return jnp.concatenate([pad(trg_bd), pad(src_bd)], axis=0)  # (2*R_DEC, kmax)


# ----------------------- hot-path wrapper (jitted) -----------------------
@jax.jit
def decoder_block(dec, enc, bias_cat, w_big, w_small):
    b, s, d = dec.shape
    se = enc.shape[1]
    # Stack dec and enc rows so all projections are one MXU push in the kernel.
    xcat = jnp.concatenate([dec.reshape(b * s, d), enc.reshape(b * se, d)], axis=0)

    out = pl.pallas_call(
        decoder_block_kernel,
        out_shape=jax.ShapeDtypeStruct((b * s, d), jnp.float32),
        grid_spec=pltpu.PrefetchScalarGridSpec(
            num_scalar_prefetch=0,
            grid=(1,),                                   # folded batch, single step
            in_specs=[
                pl.BlockSpec(xcat.shape, lambda i: (0, 0)),
                pl.BlockSpec(bias_cat.shape, lambda i: (0, 0)),
                pl.BlockSpec(w_big.shape, lambda i: (0, 0)),
                pl.BlockSpec(w_small.shape, lambda i: (0, 0)),
            ],
            out_specs=pl.BlockSpec((b * s, d), lambda i: (0, 0)),
        ),
        compiler_params=pltpu.CompilerParams(dimension_semantics=("arbitrary",)),
    )(xcat, bias_cat, w_big, w_small)
    return out.reshape(b, s, d)


# ----------------------- pure-JAX reference (verification) -----------------------
def _ref_ln(x, a, b):
    d = x.shape[-1]
    mean = x.mean(-1, keepdims=True)
    var = ((x - mean) ** 2).sum(-1, keepdims=True) / (d - 1)
    std = jnp.sqrt(var)
    return a * (x - mean) / (std + LN_EPS) + b


def _ref_mha(xq, xkv, mask, wq, wk, wv, wo):
    q = xq @ wq
    k = xkv @ wk
    v = xkv @ wv
    Bq, Sq, _ = q.shape
    Sk = k.shape[1]
    q = q.reshape(Bq, Sq, N_HEAD, D_K).transpose(0, 2, 1, 3)
    k = k.reshape(Bq, Sk, N_HEAD, D_K).transpose(0, 2, 1, 3)
    v = v.reshape(Bq, Sk, N_HEAD, D_K).transpose(0, 2, 1, 3)
    s = (q @ k.transpose(0, 1, 3, 2)) / math.sqrt(D_K)
    s = jnp.where(mask[:, None, :, :] == 0, MASK_FILL, s)
    p = jax.nn.softmax(s, axis=-1)
    o = (p @ v).transpose(0, 2, 1, 3).reshape(Bq, Sq, D_MODEL)
    return o @ wo


def decoder_block_ref(dec, enc, trg_mask, src_mask, p):
    x = _ref_mha(dec, dec, trg_mask, p["wq1"], p["wk1"], p["wv1"], p["wo1"])
    x = _ref_ln(x + dec, p["a1"][0], p["g1"][0])
    resid = x
    x = _ref_mha(dec, enc, src_mask, p["wq2"], p["wk2"], p["wv2"], p["wo2"])
    x = _ref_ln(x + resid, p["a2"][0], p["g2"][0])
    resid = x
    h = jnp.maximum(x @ p["wf1"] + p["bf1"][0], 0.0)
    x = h @ p["wf2"] + p["bf2"][0]
    x = _ref_ln(x + resid, p["a3"][0], p["g3"][0])
    return x


# ----------------------- main -----------------------
if __name__ == "__main__":
    key = jax.random.PRNGKey(0)
    ks = jax.random.split(key, 20)

    def w(k, shape, fan_in):
        return jax.random.normal(k, shape, jnp.float32) / math.sqrt(fan_in)

    params = {
        # self attention (weights stored as (in, out))
        "wq1": w(ks[0], (D_MODEL, D_MODEL), D_MODEL),
        "wk1": w(ks[1], (D_MODEL, D_MODEL), D_MODEL),
        "wv1": w(ks[2], (D_MODEL, D_MODEL), D_MODEL),
        "wo1": w(ks[3], (D_MODEL, D_MODEL), D_MODEL),
        "a1": jnp.ones((1, D_MODEL), jnp.float32),
        "g1": jnp.zeros((1, D_MODEL), jnp.float32),
        # cross attention
        "wq2": w(ks[4], (D_MODEL, D_MODEL), D_MODEL),
        "wk2": w(ks[5], (D_MODEL, D_MODEL), D_MODEL),
        "wv2": w(ks[6], (D_MODEL, D_MODEL), D_MODEL),
        "wo2": w(ks[7], (D_MODEL, D_MODEL), D_MODEL),
        "a2": jnp.ones((1, D_MODEL), jnp.float32),
        "g2": jnp.zeros((1, D_MODEL), jnp.float32),
        # feed forward
        "wf1": w(ks[8], (D_MODEL, FFN_HIDDEN), D_MODEL),
        "bf1": 0.01 * jax.random.normal(ks[9], (1, FFN_HIDDEN), jnp.float32),
        "wf2": w(ks[10], (FFN_HIDDEN, D_MODEL), FFN_HIDDEN),
        "bf2": 0.01 * jax.random.normal(ks[11], (1, D_MODEL), jnp.float32),
        "a3": jnp.ones((1, D_MODEL), jnp.float32),
        "g3": jnp.zeros((1, D_MODEL), jnp.float32),
    }

    dec = jax.random.normal(ks[12], (B, S_DEC, D_MODEL), jnp.float32)
    enc = jax.random.normal(ks[13], (B, S_ENC, D_MODEL), jnp.float32)
    # causal target mask (0 => masked), full source mask
    causal = jnp.tril(jnp.ones((S_DEC, S_DEC), jnp.float32))
    trg_mask = jnp.broadcast_to(causal, (B, S_DEC, S_DEC))
    src_mask = jnp.ones((B, S_DEC, S_ENC), jnp.float32)

    ref = decoder_block_ref(dec, enc, trg_mask, src_mask, params)

    # one-time setup (outside the per-call hot path)
    w_big, w_small = pack_params(params)
    bias_cat = pack_masks(trg_mask, src_mask)
    w_big, w_small, bias_cat = jax.block_until_ready((w_big, w_small, bias_cat))

    out = decoder_block(dec, enc, bias_cat, w_big, w_small)
    out = jax.block_until_ready(out)
    np.testing.assert_allclose(np.asarray(out), np.asarray(ref), atol=5e-3, rtol=5e-3)

    print("KERNEL_OK")
</pallas_src>

<mosaic_0001>
module attributes {stable_mosaic.version = 11 : i64} {
  func.func @decoder_block_kernel(%arg0: i32, %arg1: memref<32x32xf32, #tpu.memory_space<vmem>>, %arg2: memref<32x16xf32, #tpu.memory_space<vmem>>, %arg3: memref<32x512xf32, #tpu.memory_space<vmem>>, %arg4: memref<104x128xf32, #tpu.memory_space<vmem>>, %arg5: memref<16x32xf32, #tpu.memory_space<vmem>>) attributes {dimension_semantics = [#tpu.dimension_semantics<arbitrary>], iteration_bounds = array<i64: 1>, scalar_prefetch = 0 : i64, scratch_operands = 0 : i64, tpu.core_type = #tpu.core_type<tc>, window_params = [{pipeline_mode = #tpu.pipeline_mode<synchronous>, transform_indices = @transform_0, window_bounds = array<i64: 32, 32>}, {pipeline_mode = #tpu.pipeline_mode<synchronous>, transform_indices = @transform_1, window_bounds = array<i64: 32, 16>}, {pipeline_mode = #tpu.pipeline_mode<synchronous>, transform_indices = @transform_2, window_bounds = array<i64: 32, 512>}, {pipeline_mode = #tpu.pipeline_mode<synchronous>, transform_indices = @transform_3, window_bounds = array<i64: 104, 128>}, {pipeline_mode = #tpu.pipeline_mode<synchronous>, transform_indices = @transform_4, window_bounds = array<i64: 16, 32>}]} {
    %c0 = arith.constant 0 : index
    %c0_0 = arith.constant 0 : index
    %0 = vector.load %arg1[%c0, %c0_0] : memref<32x32xf32, #tpu.memory_space<vmem>>, vector<32x32xf32>
    %1 = vector.extract_strided_slice %0 {offsets = [0, 0], sizes = [16, 32], strides = [1, 1]} : vector<32x32xf32> to vector<16x32xf32>
    %2 = vector.extract_strided_slice %0 {offsets = [16, 0], sizes = [16, 32], strides = [1, 1]} : vector<32x32xf32> to vector<16x32xf32>
    %c0_1 = arith.constant 0 : index
    %c0_2 = arith.constant 0 : index
    %3 = vector.load %arg2[%c0_1, %c0_2] : memref<32x16xf32, #tpu.memory_space<vmem>>, vector<16x16xf32>
    %c16 = arith.constant 16 : index
    %c0_3 = arith.constant 0 : index
    %4 = vector.load %arg2[%c16, %c0_3] : memref<32x16xf32, #tpu.memory_space<vmem>>, vector<16x16xf32>
    %c0_4 = arith.constant 0 : index
    %c0_5 = arith.constant 0 : index
    %5 = vector.load %arg3[%c0_4, %c0_5] : memref<32x512xf32, #tpu.memory_space<vmem>>, vector<32x512xf32>
    %cst = arith.constant dense<0.000000e+00> : vector<32x512xf32>
    %6 = tpu.matmul %0, %5, %cst {dimension_numbers = #tpu.dot_dimension_numbers<[1], [0], [0], [1], [0, 0, 1, 1], [], []>} : vector<32x32xf32>, vector<32x512xf32>, vector<32x512xf32> -> vector<32x512xf32>
    %7 = vector.extract_strided_slice %6 {offsets = [0, 0], sizes = [16, 128], strides = [1, 1]} : vector<32x512xf32> to vector<16x128xf32>
    %8 = vector.extract_strided_slice %6 {offsets = [0, 128], sizes = [16, 128], strides = [1, 1]} : vector<32x512xf32> to vector<16x128xf32>
    %9 = vector.extract_strided_slice %6 {offsets = [0, 256], sizes = [16, 128], strides = [1, 1]} : vector<32x512xf32> to vector<16x128xf32>
    %10 = vector.extract_strided_slice %6 {offsets = [16, 384], sizes = [16, 128], strides = [1, 1]} : vector<32x512xf32> to vector<16x128xf32>
    %c96 = arith.constant 96 : index
    %c0_6 = arith.constant 0 : index
    %11 = vector.load %arg4[%c96, %c0_6] : memref<104x128xf32, #tpu.memory_space<vmem>>, vector<8x128xf32>
    %12 = vector.extract_strided_slice %11 {offsets = [0, 0], sizes = [1, 64], strides = [1, 1]} : vector<8x128xf32> to vector<1x64xf32>
    %13 = vector.extract_strided_slice %11 {offsets = [1, 0], sizes = [1, 32], strides = [1, 1]} : vector<8x128xf32> to vector<1x32xf32>
    %14 = vector.extract_strided_slice %11 {offsets = [2, 0], sizes = [1, 32], strides = [1, 1]} : vector<8x128xf32> to vector<1x32xf32>
    %15 = vector.extract_strided_slice %11 {offsets = [3, 0], sizes = [1, 32], strides = [1, 1]} : vector<8x128xf32> to vector<1x32xf32>
    %16 = vector.extract_strided_slice %11 {offsets = [4, 0], sizes = [1, 32], strides = [1, 1]} : vector<8x128xf32> to vector<1x32xf32>
    %17 = vector.extract_strided_slice %11 {offsets = [5, 0], sizes = [1, 32], strides = [1, 1]} : vector<8x128xf32> to vector<1x32xf32>
    %18 = vector.extract_strided_slice %11 {offsets = [6, 0], sizes = [1, 32], strides = [1, 1]} : vector<8x128xf32> to vector<1x32xf32>
    %19 = vector.extract_strided_slice %11 {offsets = [7, 0], sizes = [1, 32], strides = [1, 1]} : vector<8x128xf32> to vector<1x32xf32>
    %20 = vector.extract_strided_slice %7 {offsets = [0, 0], sizes = [16, 32], strides = [1, 1]} : vector<16x128xf32> to vector<16x32xf32>
    %cst_7 = arith.constant dense<0.000000e+00> : vector<16x16xf32>
    %21 = tpu.matmul %20, %1, %cst_7 {dimension_numbers = #tpu.dot_dimension_numbers<[1], [1], [0], [0], [0, 0, 1, 0], [], []>} : vector<16x32xf32>, vector<16x32xf32>, vector<16x16xf32> -> vector<16x16xf32>
    %22 = arith.addf %21, %3 : vector<16x16xf32>
    %cst_8 = arith.constant dense<0xFF800000> : vector<16xf32>
    %23 = vector.multi_reduction <maximumf>, %22, %cst_8 [1] : vector<16x16xf32> to vector<16xf32>
    %24 = vector.shape_cast %23 : vector<16xf32> to vector<16x1xf32>
    %25 = vector.broadcast %24 : vector<16x1xf32> to vector<16x16xf32>
    %26 = arith.subf %22, %25 : vector<16x16xf32>
    %27 = math.exp %26 : vector<16x16xf32>
    %cst_9 = arith.constant dense<0.000000e+00> : vector<16xf32>
    %28 = vector.multi_reduction <add>, %27, %cst_9 [1] : vector<16x16xf32> to vector<16xf32>
    %29 = vector.shape_cast %28 : vector<16xf32> to vector<16x1xf32>
    %30 = tpu.reciprocal %29 {approx = true} : vector<16x1xf32> -> vector<16x1xf32>
    %31 = vector.broadcast %30 : vector<16x1xf32> to vector<16x16xf32>
    %32 = arith.mulf %27, %31 : vector<16x16xf32>
    %33 = vector.extract_strided_slice %8 {offsets = [0, 0], sizes = [16, 32], strides = [1, 1]} : vector<16x128xf32> to vector<16x32xf32>
    %cst_10 = arith.constant dense<0.000000e+00> : vector<16x32xf32>
    %34 = tpu.matmul %32, %33, %cst_10 {dimension_numbers = #tpu.dot_dimension_numbers<[1], [0], [0], [1], [0, 0, 1, 1], [], []>} : vector<16x16xf32>, vector<16x32xf32>, vector<16x32xf32> -> vector<16x32xf32>
    %35 = vector.extract_strided_slice %7 {offsets = [0, 32], sizes = [16, 32], strides = [1, 1]} : vector<16x128xf32> to vector<16x32xf32>
    %cst_11 = arith.constant dense<0.000000e+00> : vector<16x16xf32>
    %36 = tpu.matmul %35, %1, %cst_11 {dimension_numbers = #tpu.dot_dimension_numbers<[1], [1], [0], [0], [0, 0, 1, 0], [], []>} : vector<16x32xf32>, vector<16x32xf32>, vector<16x16xf32> -> vector<16x16xf32>
    %37 = arith.addf %36, %3 : vector<16x16xf32>
    %cst_12 = arith.constant dense<0xFF800000> : vector<16xf32>
    %38 = vector.multi_reduction <maximumf>, %37, %cst_12 [1] : vector<16x16xf32> to vector<16xf32>
    %39 = vector.shape_cast %38 : vector<16xf32> to vector<16x1xf32>
    %40 = vector.broadcast %39 : vector<16x1xf32> to vector<16x16xf32>
    %41 = arith.subf %37, %40 : vector<16x16xf32>
    %42 = math.exp %41 : vector<16x16xf32>
    %cst_13 = arith.constant dense<0.000000e+00> : vector<16xf32>
    %43 = vector.multi_reduction <add>, %42, %cst_13 [1] : vector<16x16xf32> to vector<16xf32>
    %44 = vector.shape_cast %43 : vector<16xf32> to vector<16x1xf32>
    %45 = tpu.reciprocal %44 {approx = true} : vector<16x1xf32> -> vector<16x1xf32>
    %46 = vector.broadcast %45 : vector<16x1xf32> to vector<16x16xf32>
    %47 = arith.mulf %42, %46 : vector<16x16xf32>
    %48 = vector.extract_strided_slice %8 {offsets = [0, 32], sizes = [16, 32], strides = [1, 1]} : vector<16x128xf32> to vector<16x32xf32>
    %cst_14 = arith.constant dense<0.000000e+00> : vector<16x32xf32>
    %49 = tpu.matmul %47, %48, %cst_14 {dimension_numbers = #tpu.dot_dimension_numbers<[1], [0], [0], [1], [0, 0, 1, 1], [], []>} : vector<16x16xf32>, vector<16x32xf32>, vector<16x32xf32> -> vector<16x32xf32>
    %50 = arith.addf %34, %49 : vector<16x32xf32>
    %51 = vector.extract_strided_slice %7 {offsets = [0, 64], sizes = [16, 32], strides = [1, 1]} : vector<16x128xf32> to vector<16x32xf32>
    %cst_15 = arith.constant dense<0.000000e+00> : vector<16x16xf32>
    %52 = tpu.matmul %51, %1, %cst_15 {dimension_numbers = #tpu.dot_dimension_numbers<[1], [1], [0], [0], [0, 0, 1, 0], [], []>} : vector<16x32xf32>, vector<16x32xf32>, vector<16x16xf32> -> vector<16x16xf32>
    %53 = arith.addf %52, %3 : vector<16x16xf32>
    %cst_16 = arith.constant dense<0xFF800000> : vector<16xf32>
    %54 = vector.multi_reduction <maximumf>, %53, %cst_16 [1] : vector<16x16xf32> to vector<16xf32>
    %55 = vector.shape_cast %54 : vector<16xf32> to vector<16x1xf32>
    %56 = vector.broadcast %55 : vector<16x1xf32> to vector<16x16xf32>
    %57 = arith.subf %53, %56 : vector<16x16xf32>
    %58 = math.exp %57 : vector<16x16xf32>
    %cst_17 = arith.constant dense<0.000000e+00> : vector<16xf32>
    %59 = vector.multi_reduction <add>, %58, %cst_17 [1] : vector<16x16xf32> to vector<16xf32>
    %60 = vector.shape_cast %59 : vector<16xf32> to vector<16x1xf32>
    %61 = tpu.reciprocal %60 {approx = true} : vector<16x1xf32> -> vector<16x1xf32>
    %62 = vector.broadcast %61 : vector<16x1xf32> to vector<16x16xf32>
    %63 = arith.mulf %58, %62 : vector<16x16xf32>
    %64 = vector.extract_strided_slice %8 {offsets = [0, 64], sizes = [16, 32], strides = [1, 1]} : vector<16x128xf32> to vector<16x32xf32>
    %cst_18 = arith.constant dense<0.000000e+00> : vector<16x32xf32>
    %65 = tpu.matmul %63, %64, %cst_18 {dimension_numbers = #tpu.dot_dimension_numbers<[1], [0], [0], [1], [0, 0, 1, 1], [], []>} : vector<16x16xf32>, vector<16x32xf32>, vector<16x32xf32> -> vector<16x32xf32>
    %66 = arith.addf %50, %65 : vector<16x32xf32>
    %67 = vector.extract_strided_slice %7 {offsets = [0, 96], sizes = [16, 32], strides = [1, 1]} : vector<16x128xf32> to vector<16x32xf32>
    %cst_19 = arith.constant dense<0.000000e+00> : vector<16x16xf32>
    %68 = tpu.matmul %67, %1, %cst_19 {dimension_numbers = #tpu.dot_dimension_numbers<[1], [1], [0], [0], [0, 0, 1, 0], [], []>} : vector<16x32xf32>, vector<16x32xf32>, vector<16x16xf32> -> vector<16x16xf32>
    %69 = arith.addf %68, %3 : vector<16x16xf32>
    %cst_20 = arith.constant dense<0xFF800000> : vector<16xf32>
    %70 = vector.multi_reduction <maximumf>, %69, %cst_20 [1] : vector<16x16xf32> to vector<16xf32>
    %71 = vector.shape_cast %70 : vector<16xf32> to vector<16x1xf32>
    %72 = vector.broadcast %71 : vector<16x1xf32> to vector<16x16xf32>
    %73 = arith.subf %69, %72 : vector<16x16xf32>
    %74 = math.exp %73 : vector<16x16xf32>
    %cst_21 = arith.constant dense<0.000000e+00> : vector<16xf32>
    %75 = vector.multi_reduction <add>, %74, %cst_21 [1] : vector<16x16xf32> to vector<16xf32>
    %76 = vector.shape_cast %75 : vector<16xf32> to vector<16x1xf32>
    %77 = tpu.reciprocal %76 {approx = true} : vector<16x1xf32> -> vector<16x1xf32>
    %78 = vector.broadcast %77 : vector<16x1xf32> to vector<16x16xf32>
    %79 = arith.mulf %74, %78 : vector<16x16xf32>
    %80 = vector.extract_strided_slice %8 {offsets = [0, 96], sizes = [16, 32], strides = [1, 1]} : vector<16x128xf32> to vector<16x32xf32>
    %cst_22 = arith.constant dense<0.000000e+00> : vector<16x32xf32>
    %81 = tpu.matmul %79, %80, %cst_22 {dimension_numbers = #tpu.dot_dimension_numbers<[1], [0], [0], [1], [0, 0, 1, 1], [], []>} : vector<16x16xf32>, vector<16x32xf32>, vector<16x32xf32> -> vector<16x32xf32>
    %82 = arith.addf %66, %81 : vector<16x32xf32>
    %83 = arith.addf %82, %1 : vector<16x32xf32>
    %cst_23 = arith.constant dense<0.000000e+00> : vector<16xf32>
    %84 = vector.multi_reduction <add>, %83, %cst_23 [1] : vector<16x32xf32> to vector<16xf32>
    %85 = vector.shape_cast %84 : vector<16xf32> to vector<16x1xf32>
    %cst_24 = arith.constant 3.200000e+01 : f32
    %86 = vector.broadcast %cst_24 : f32 to vector<16x1xf32>
    %87 = arith.divf %85, %86 : vector<16x1xf32>
    %88 = vector.broadcast %87 : vector<16x1xf32> to vector<16x32xf32>
    %89 = arith.subf %83, %88 : vector<16x32xf32>
    %90 = arith.mulf %89, %89 : vector<16x32xf32>
    %cst_25 = arith.constant dense<0.000000e+00> : vector<16xf32>
    %91 = vector.multi_reduction <add>, %90, %cst_25 [1] : vector<16x32xf32> to vector<16xf32>
    %92 = vector.shape_cast %91 : vector<16xf32> to vector<16x1xf32>
    %cst_26 = arith.constant 0.0322580636 : f32
    %93 = vector.broadcast %cst_26 : f32 to vector<16x1xf32>
    %94 = arith.mulf %92, %93 : vector<16x1xf32>
    %cst_27 = arith.constant 9.99999996E-13 : f32
    %95 = vector.broadcast %cst_27 : f32 to vector<16x1xf32>
    %96 = arith.addf %94, %95 : vector<16x1xf32>
    %97 = math.rsqrt %96 : vector<16x1xf32>
    %98 = vector.broadcast %14 : vector<1x32xf32> to vector<16x32xf32>
    %99 = arith.mulf %98, %89 : vector<16x32xf32>
    %100 = vector.broadcast %97 : vector<16x1xf32> to vector<16x32xf32>
    %101 = arith.mulf %99, %100 : vector<16x32xf32>
    %102 = vector.broadcast %15 : vector<1x32xf32> to vector<16x32xf32>
    %103 = arith.addf %101, %102 : vector<16x32xf32>
    %104 = vector.extract_strided_slice %9 {offsets = [0, 0], sizes = [16, 32], strides = [1, 1]} : vector<16x128xf32> to vector<16x32xf32>
    %cst_28 = arith.constant dense<0.000000e+00> : vector<16x16xf32>
    %105 = tpu.matmul %104, %2, %cst_28 {dimension_numbers = #tpu.dot_dimension_numbers<[1], [1], [0], [0], [0, 0, 1, 0], [], []>} : vector<16x32xf32>, vector<16x32xf32>, vector<16x16xf32> -> vector<16x16xf32>
    %106 = arith.addf %105, %4 : vector<16x16xf32>
    %cst_29 = arith.constant dense<0xFF800000> : vector<16xf32>
    %107 = vector.multi_reduction <maximumf>, %106, %cst_29 [1] : vector<16x16xf32> to vector<16xf32>
    %108 = vector.shape_cast %107 : vector<16xf32> to vector<16x1xf32>
    %109 = vector.broadcast %108 : vector<16x1xf32> to vector<16x16xf32>
    %110 = arith.subf %106, %109 : vector<16x16xf32>
    %111 = math.exp %110 : vector<16x16xf32>
    %cst_30 = arith.constant dense<0.000000e+00> : vector<16xf32>
    %112 = vector.multi_reduction <add>, %111, %cst_30 [1] : vector<16x16xf32> to vector<16xf32>
    %113 = vector.shape_cast %112 : vector<16xf32> to vector<16x1xf32>
    %114 = tpu.reciprocal %113 {approx = true} : vector<16x1xf32> -> vector<16x1xf32>
    %115 = vector.broadcast %114 : vector<16x1xf32> to vector<16x16xf32>
    %116 = arith.mulf %111, %115 : vector<16x16xf32>
    %117 = vector.extract_strided_slice %10 {offsets = [0, 0], sizes = [16, 32], strides = [1, 1]} : vector<16x128xf32> to vector<16x32xf32>
    %cst_31 = arith.constant dense<0.000000e+00> : vector<16x32xf32>
    %118 = tpu.matmul %116, %117, %cst_31 {dimension_numbers = #tpu.dot_dimension_numbers<[1], [0], [0], [1], [0, 0, 1, 1], [], []>} : vector<16x16xf32>, vector<16x32xf32>, vector<16x32xf32> -> vector<16x32xf32>
    %119 = vector.extract_strided_slice %9 {offsets = [0, 32], sizes = [16, 32], strides = [1, 1]} : vector<16x128xf32> to vector<16x32xf32>
    %cst_32 = arith.constant dense<0.000000e+00> : vector<16x16xf32>
    %120 = tpu.matmul %119, %2, %cst_32 {dimension_numbers = #tpu.dot_dimension_numbers<[1], [1], [0], [0], [0, 0, 1, 0], [], []>} : vector<16x32xf32>, vector<16x32xf32>, vector<16x16xf32> -> vector<16x16xf32>
    %121 = arith.addf %120, %4 : vector<16x16xf32>
    %cst_33 = arith.constant dense<0xFF800000> : vector<16xf32>
    %122 = vector.multi_reduction <maximumf>, %121, %cst_33 [1] : vector<16x16xf32> to vector<16xf32>
    %123 = vector.shape_cast %122 : vector<16xf32> to vector<16x1xf32>
    %124 = vector.broadcast %123 : vector<16x1xf32> to vector<16x16xf32>
    %125 = arith.subf %121, %124 : vector<16x16xf32>
    %126 = math.exp %125 : vector<16x16xf32>
    %cst_34 = arith.constant dense<0.000000e+00> : vector<16xf32>
    %127 = vector.multi_reduction <add>, %126, %cst_34 [1] : vector<16x16xf32> to vector<16xf32>
    %128 = vector.shape_cast %127 : vector<16xf32> to vector<16x1xf32>
    %129 = tpu.reciprocal %128 {approx = true} : vector<16x1xf32> -> vector<16x1xf32>
    %130 = vector.broadcast %129 : vector<16x1xf32> to vector<16x16xf32>
    %131 = arith.mulf %126, %130 : vector<16x16xf32>
    %132 = vector.extract_strided_slice %10 {offsets = [0, 32], sizes = [16, 32], strides = [1, 1]} : vector<16x128xf32> to vector<16x32xf32>
    %cst_35 = arith.constant dense<0.000000e+00> : vector<16x32xf32>
    %133 = tpu.matmul %131, %132, %cst_35 {dimension_numbers = #tpu.dot_dimension_numbers<[1], [0], [0], [1], [0, 0, 1, 1], [], []>} : vector<16x16xf32>, vector<16x32xf32>, vector<16x32xf32> -> vector<16x32xf32>
    %134 = arith.addf %118, %133 : vector<16x32xf32>
    %135 = vector.extract_strided_slice %9 {offsets = [0, 64], sizes = [16, 32], strides = [1, 1]} : vector<16x128xf32> to vector<16x32xf32>
    %cst_36 = arith.constant dense<0.000000e+00> : vector<16x16xf32>
    %136 = tpu.matmul %135, %2, %cst_36 {dimension_numbers = #tpu.dot_dimension_numbers<[1], [1], [0], [0], [0, 0, 1, 0], [], []>} : vector<16x32xf32>, vector<16x32xf32>, vector<16x16xf32> -> vector<16x16xf32>
    %137 = arith.addf %136, %4 : vector<16x16xf32>
    %cst_37 = arith.constant dense<0xFF800000> : vector<16xf32>
    %138 = vector.multi_reduction <maximumf>, %137, %cst_37 [1] : vector<16x16xf32> to vector<16xf32>
    %139 = vector.shape_cast %138 : vector<16xf32> to vector<16x1xf32>
    %140 = vector.broadcast %139 : vector<16x1xf32> to vector<16x16xf32>
    %141 = arith.subf %137, %140 : vector<16x16xf32>
    %142 = math.exp %141 : vector<16x16xf32>
    %cst_38 = arith.constant dense<0.000000e+00> : vector<16xf32>
    %143 = vector.multi_reduction <add>, %142, %cst_38 [1] : vector<16x16xf32> to vector<16xf32>
    %144 = vector.shape_cast %143 : vector<16xf32> to vector<16x1xf32>
    %145 = tpu.reciprocal %144 {approx = true} : vector<16x1xf32> -> vector<16x1xf32>
    %146 = vector.broadcast %145 : vector<16x1xf32> to vector<16x16xf32>
    %147 = arith.mulf %142, %146 : vector<16x16xf32>
    %148 = vector.extract_strided_slice %10 {offsets = [0, 64], sizes = [16, 32], strides = [1, 1]} : vector<16x128xf32> to vector<16x32xf32>
    %cst_39 = arith.constant dense<0.000000e+00> : vector<16x32xf32>
    %149 = tpu.matmul %147, %148, %cst_39 {dimension_numbers = #tpu.dot_dimension_numbers<[1], [0], [0], [1], [0, 0, 1, 1], [], []>} : vector<16x16xf32>, vector<16x32xf32>, vector<16x32xf32> -> vector<16x32xf32>
    %150 = arith.addf %134, %149 : vector<16x32xf32>
    %151 = vector.extract_strided_slice %9 {offsets = [0, 96], sizes = [16, 32], strides = [1, 1]} : vector<16x128xf32> to vector<16x32xf32>
    %cst_40 = arith.constant dense<0.000000e+00> : vector<16x16xf32>
    %152 = tpu.matmul %151, %2, %cst_40 {dimension_numbers = #tpu.dot_dimension_numbers<[1], [1], [0], [0], [0, 0, 1, 0], [], []>} : vector<16x32xf32>, vector<16x32xf32>, vector<16x16xf32> -> vector<16x16xf32>
    %153 = arith.addf %152, %4 : vector<16x16xf32>
    %cst_41 = arith.constant dense<0xFF800000> : vector<16xf32>
    %154 = vector.multi_reduction <maximumf>, %153, %cst_41 [1] : vector<16x16xf32> to vector<16xf32>
    %155 = vector.shape_cast %154 : vector<16xf32> to vector<16x1xf32>
    %156 = vector.broadcast %155 : vector<16x1xf32> to vector<16x16xf32>
    %157 = arith.subf %153, %156 : vector<16x16xf32>
    %158 = math.exp %157 : vector<16x16xf32>
    %cst_42 = arith.constant dense<0.000000e+00> : vector<16xf32>
    %159 = vector.multi_reduction <add>, %158, %cst_42 [1] : vector<16x16xf32> to vector<16xf32>
    %160 = vector.shape_cast %159 : vector<16xf32> to vector<16x1xf32>
    %161 = tpu.reciprocal %160 {approx = true} : vector<16x1xf32> -> vector<16x1xf32>
    %162 = vector.broadcast %161 : vector<16x1xf32> to vector<16x16xf32>
    %163 = arith.mulf %158, %162 : vector<16x16xf32>
    %164 = vector.extract_strided_slice %10 {offsets = [0, 96], sizes = [16, 32], strides = [1, 1]} : vector<16x128xf32> to vector<16x32xf32>
    %cst_43 = arith.constant dense<0.000000e+00> : vector<16x32xf32>
    %165 = tpu.matmul %163, %164, %cst_43 {dimension_numbers = #tpu.dot_dimension_numbers<[1], [0], [0], [1], [0, 0, 1, 1], [], []>} : vector<16x16xf32>, vector<16x32xf32>, vector<16x32xf32> -> vector<16x32xf32>
    %166 = arith.addf %150, %165 : vector<16x32xf32>
    %167 = arith.addf %166, %103 : vector<16x32xf32>
    %cst_44 = arith.constant dense<0.000000e+00> : vector<16xf32>
    %168 = vector.multi_reduction <add>, %167, %cst_44 [1] : vector<16x32xf32> to vector<16xf32>
    %169 = vector.shape_cast %168 : vector<16xf32> to vector<16x1xf32>
    %cst_45 = arith.constant 3.200000e+01 : f32
    %170 = vector.broadcast %cst_45 : f32 to vector<16x1xf32>
    %171 = arith.divf %169, %170 : vector<16x1xf32>
    %172 = vector.broadcast %171 : vector<16x1xf32> to vector<16x32xf32>
    %173 = arith.subf %167, %172 : vector<16x32xf32>
    %174 = arith.mulf %173, %173 : vector<16x32xf32>
    %cst_46 = arith.constant dense<0.000000e+00> : vector<16xf32>
    %175 = vector.multi_reduction <add>, %174, %cst_46 [1] : vector<16x32xf32> to vector<16xf32>
    %176 = vector.shape_cast %175 : vector<16xf32> to vector<16x1xf32>
    %cst_47 = arith.constant 0.0322580636 : f32
    %177 = vector.broadcast %cst_47 : f32 to vector<16x1xf32>
    %178 = arith.mulf %176, %177 : vector<16x1xf32>
    %cst_48 = arith.constant 9.99999996E-13 : f32
    %179 = vector.broadcast %cst_48 : f32 to vector<16x1xf32>
    %180 = arith.addf %178, %179 : vector<16x1xf32>
    %181 = math.rsqrt %180 : vector<16x1xf32>
    %182 = vector.broadcast %16 : vector<1x32xf32> to vector<16x32xf32>
    %183 = arith.mulf %182, %173 : vector<16x32xf32>
    %184 = vector.broadcast %181 : vector<16x1xf32> to vector<16x32xf32>
    %185 = arith.mulf %183, %184 : vector<16x32xf32>
    %186 = vector.broadcast %17 : vector<1x32xf32> to vector<16x32xf32>
    %187 = arith.addf %185, %186 : vector<16x32xf32>
    %c0_49 = arith.constant 0 : index
    %c0_50 = arith.constant 0 : index
    %188 = vector.load %arg4[%c0_49, %c0_50] : memref<104x128xf32, #tpu.memory_space<vmem>>, vector<32x64xf32>
    %cst_51 = arith.constant dense<0.000000e+00> : vector<16x64xf32>
    %189 = tpu.matmul %187, %188, %cst_51 {dimension_numbers = #tpu.dot_dimension_numbers<[1], [0], [0], [1], [0, 0, 1, 1], [], []>} : vector<16x32xf32>, vector<32x64xf32>, vector<16x64xf32> -> vector<16x64xf32>
    %190 = vector.broadcast %12 : vector<1x64xf32> to vector<16x64xf32>
    %191 = arith.addf %189, %190 : vector<16x64xf32>
    %cst_52 = arith.constant 0.000000e+00 : f32
    %192 = vector.broadcast %cst_52 : f32 to vector<16x64xf32>
    %193 = arith.maximumf %191, %192 : vector<16x64xf32>
    %c32 = arith.constant 32 : index
    %c0_53 = arith.constant 0 : index
    %194 = vector.load %arg4[%c32, %c0_53] : memref<104x128xf32, #tpu.memory_space<vmem>>, vector<64x32xf32>
    %cst_54 = arith.constant dense<0.000000e+00> : vector<16x32xf32>
    %195 = tpu.matmul %193, %194, %cst_54 {dimension_numbers = #tpu.dot_dimension_numbers<[1], [0], [0], [1], [0, 0, 1, 1], [], []>} : vector<16x64xf32>, vector<64x32xf32>, vector<16x32xf32> -> vector<16x32xf32>
    %196 = vector.broadcast %13 : vector<1x32xf32> to vector<16x32xf32>
    %197 = arith.addf %195, %196 : vector<16x32xf32>
    %198 = arith.addf %197, %187 : vector<16x32xf32>
    %cst_55 = arith.constant dense<0.000000e+00> : vector<16xf32>
    %199 = vector.multi_reduction <add>, %198, %cst_55 [1] : vector<16x32xf32> to vector<16xf32>
    %200 = vector.shape_cast %199 : vector<16xf32> to vector<16x1xf32>
    %cst_56 = arith.constant 3.200000e+01 : f32
    %201 = vector.broadcast %cst_56 : f32 to vector<16x1xf32>
    %202 = arith.divf %200, %201 : vector<16x1xf32>
    %203 = vector.broadcast %202 : vector<16x1xf32> to vector<16x32xf32>
    %204 = arith.subf %198, %203 : vector<16x32xf32>
    %205 = arith.mulf %204, %204 : vector<16x32xf32>
    %cst_57 = arith.constant dense<0.000000e+00> : vector<16xf32>
    %206 = vector.multi_reduction <add>, %205, %cst_57 [1] : vector<16x32xf32> to vector<16xf32>
    %207 = vector.shape_cast %206 : vector<16xf32> to vector<16x1xf32>
    %cst_58 = arith.constant 0.0322580636 : f32
    %208 = vector.broadcast %cst_58 : f32 to vector<16x1xf32>
    %209 = arith.mulf %207, %208 : vector<16x1xf32>
    %cst_59 = arith.constant 9.99999996E-13 : f32
    %210 = vector.broadcast %cst_59 : f32 to vector<16x1xf32>
    %211 = arith.addf %209, %210 : vector<16x1xf32>
    %212 = math.rsqrt %211 : vector<16x1xf32>
    %213 = vector.broadcast %18 : vector<1x32xf32> to vector<16x32xf32>
    %214 = arith.mulf %213, %204 : vector<16x32xf32>
    %215 = vector.broadcast %212 : vector<16x1xf32> to vector<16x32xf32>
    %216 = arith.mulf %214, %215 : vector<16x32xf32>
    %217 = vector.broadcast %19 : vector<1x32xf32> to vector<16x32xf32>
    %218 = arith.addf %216, %217 : vector<16x32xf32>
    %c0_60 = arith.constant 0 : index
    %c0_61 = arith.constant 0 : index
    %219 = vector.load %arg5[%c0_60, %c0_61] : memref<16x32xf32, #tpu.memory_space<vmem>>, vector<16x32xf32>
    tpu.vector_store %arg5[%c0_60, %c0_61], %218 {strides = array<i32>} : memref<16x32xf32, #tpu.memory_space<vmem>>, vector<16x32xf32>,
    return
  }
  func.func @transform_0(%arg0: i32) -> (i32, i32) {
    %c0_i32 = arith.constant 0 : i32
    %c0_i32_0 = arith.constant 0 : i32
    %c0_i32_1 = arith.constant 0 : i32
    return %c0_i32, %c0_i32_0 : i32, i32
  }
  func.func @transform_1(%arg0: i32) -> (i32, i32) {
    %c0_i32 = arith.constant 0 : i32
    %c0_i32_0 = arith.constant 0 : i32
    %c0_i32_1 = arith.constant 0 : i32
    return %c0_i32, %c0_i32_0 : i32, i32
  }
  func.func @transform_2(%arg0: i32) -> (i32, i32) {
    %c0_i32 = arith.constant 0 : i32
    %c0_i32_0 = arith.constant 0 : i32
    %c0_i32_1 = arith.constant 0 : i32
    return %c0_i32, %c0_i32_0 : i32, i32
  }
  func.func @transform_3(%arg0: i32) -> (i32, i32) {
    %c0_i32 = arith.constant 0 : i32
    %c0_i32_0 = arith.constant 0 : i32
    %c0_i32_1 = arith.constant 0 : i32
    return %c0_i32, %c0_i32_0 : i32, i32
  }
  func.func @transform_4(%arg0: i32) -> (i32, i32) {
    %c0_i32 = arith.constant 0 : i32
    %c0_i32_0 = arith.constant 0 : i32
    %c0_i32_1 = arith.constant 0 : i32
    return %c0_i32, %c0_i32_0 : i32, i32
  }
}

</mosaic_0001>

<llo_original>
// kernel: decoder_block.1
$region0: #{decoder_block.1}
  #allocation0 [shape = 'u32[]', space=smem, size = 0x4, offset = 0x4, fixed_abs, tag = 'smem constant byte address 0x4 - core index']
  #allocation1 [shape = 'u32[144,128]{1,0:T(1,128)}', space=vmem, size = 0x12000, scoped, tag = 'internal scratch']
  %s0 = inlined_call_operand.vmem [shape: f32[32,32], index: 0, kind: input, shape index: {}]
  %s1 = inlined_call_operand.vmem [shape: f32[32,16], index: 1, kind: input, shape index: {}]
  %s2 = inlined_call_operand.vmem [shape: f32[32,512], index: 2, kind: input, shape index: {}]
  %s3 = inlined_call_operand.hbm [shape: f32[104,128], index: 3, kind: input, shape index: {}]
  %s4 = inlined_call_operand.hbm [shape: f32[16,32], index: 4, kind: output, shape index: {}]
  %s5 = sld [smem:[#allocation0]]
  $region30: #{decoder_block.1} parent=0
    _
  %s7 = ssub.s32 1, %s5
  %s8 = scalar_select 0, %s7, %s5
  $region1: #{decoder_block.1} parent=0
    #allocation2 [shape = 'u8[53248]{0}', space=vmem, size = 0xd000, scoped, tag = 'input window, operand 3, single buffered']
    #allocation3 [shape = 's32[1]{0}', space=sflag, size = 0x4, scoped, tag = 'scoped memory for decoder_block.1']
    #allocation4 [shape = 's32[1]{0}', space=sflag, size = 0x4, scoped, tag = 'scoped memory for decoder_block.1']
    #allocation5 [shape = 'u8[8192]{0}', space=vmem, size = 0x2000, scoped, tag = 'output window, operand 0, single buffered']
    %9 = vsyncpa [#allocation3], 0
    %10 = vsyncpa [#allocation4], 0
    // Predicated region
    $region2: #{decoder_block.1} parent=1 // pred_check
      _
    $region3: #{decoder_block.1} parent=1 // pred_check_branch
      %12 = sbr.rel (0) target = $region5
    $region4: #{decoder_block.1} parent=1 // pred_region
      _
    $region5: #{decoder_block.1} parent=1 // pred_fallthru
      _
    // Predicated region
    $region6: #{decoder_block.1} parent=1 // pred_check
      _
    $region7: #{decoder_block.1} parent=1 // pred_check_branch
      %14 = sbr.rel (0) target = $region9
    $region8: #{decoder_block.1} parent=1 // pred_region
      _
    $region9: #{decoder_block.1} parent=1 // pred_fallthru
      _
    // Predicated region
    $region10: #{decoder_block.1} parent=1 // pred_check
      _
    $region11: #{decoder_block.1} parent=1 // pred_check_branch
      %16 = sbr.rel (0) target = $region13
    $region12: #{decoder_block.1} parent=1 // pred_region
      _
    $region13: #{decoder_block.1} parent=1 // pred_fallthru
      _
    // Predicated region
    $region14: #{decoder_block.1} parent=1 // pred_check
      _
    $region15: #{decoder_block.1} parent=1 // pred_check_branch
      %18 = sbr.rel (0) target = $region17
    $region16: #{decoder_block.1} parent=1 // pred_region
      %s20 = ssub.s32 1664, 1664
      %21 = vsyncadd [#allocation3], %s20
      %s22 = sshll.u32 [#allocation2], 4
      %s23 = int_to_ptr.vmem [resolvable:$true] %s22
      %28 = dma.hbm_to_vmem [thread:$0]  %s3, 1664, %s23, [#allocation3], 128, 128, 8
    $region17: #{decoder_block.1} parent=1 // pred_fallthru
      _
    // Predicated region
    $region18: #{decoder_block.1} parent=1 // pred_check
      _
    $region19: #{decoder_block.1} parent=1 // pred_check_branch
      %30 = sbr.rel (0) target = $region21
    $region20: #{decoder_block.1} parent=1 // pred_region
      %31 = dma.done [#allocation3], 1664
    $region21: #{decoder_block.1} parent=1 // pred_fallthru
      _
    %v32 = vld [vmem:[%s0] sm:$0xff]
    %v33 = vld [vmem:[%s0 + $0x8] sm:$0xff]
    %v34 = vld [vmem:[%s0 + $0x10] sm:$0xff]
    %v35 = vld [vmem:[%s0 + $0x18] sm:$0xff]
    %v36 = vld [vmem:[%s1] sm:$0xff]
    %v37 = vld [vmem:[%s1 + $0x8] sm:$0xff]
    %v38 = vld [vmem:[%s1 + $0x10] sm:$0xff]
    %v39 = vld [vmem:[%s1 + $0x18] sm:$0xff]
    %v40 = vld [vmem:[%s2] sm:$0xff]
    %v41 = vld [vmem:[%s2 + $0x8] sm:$0xff]
    %v42 = vld [vmem:[%s2 + $0x10] sm:$0xff]
    %v43 = vld [vmem:[%s2 + $0x18] sm:$0xff]
    %v44 = vld [vmem:[%s2 + $0x20] sm:$0xff]
    %v45 = vld [vmem:[%s2 + $0x28] sm:$0xff]
    %v46 = vld [vmem:[%s2 + $0x30] sm:$0xff]
    %v47 = vld [vmem:[%s2 + $0x38] sm:$0xff]
    %v48 = vld [vmem:[%s2 + $0x40] sm:$0xff]
    %v49 = vld [vmem:[%s2 + $0x48] sm:$0xff]
    %v50 = vld [vmem:[%s2 + $0x50] sm:$0xff]
    %v51 = vld [vmem:[%s2 + $0x58] sm:$0xff]
    %v52 = vld [vmem:[%s2 + $0x60] sm:$0xff]
    %v53 = vld [vmem:[%s2 + $0x68] sm:$0xff]
    %v54 = vld [vmem:[%s2 + $0x70] sm:$0xff]
    %v55 = vld [vmem:[%s2 + $0x78] sm:$0xff]
    %vm56 = vcmask 261120
    %v58 = vsel %vm56, %v32, 0
    %v61 = vsel %vm56, %v33, 0
    %v64 = vsel %vm56, %v34, 0
    %v67 = vsel %vm56, %v35, 0
    %69 = vmatprep.subr.mxu0 %v41
    %70 = vmatpush1.msra.mxu0 %v40
    %71 = vmatprep.subr.mxu0 %v45
    %72 = vmatpush1.msra.mxu0 %v44
    %73 = vmatprep.subr.mxu0 %v49
    %74 = vmatpush1.msra.mxu0 %v48
    %75 = vmatprep.subr.mxu0 %v53
    %76 = vmatpush1.msra.mxu0 %v52
    %77 = vmatprep.subr.mxu0 0.0
    %78 = vmatpush1.msra.mxu0 0.0
    %79 = vmatprep.subr.mxu0 0.0
    %80 = vmatpush1.msra.mxu0 0.0
    %81 = vmatprep.subr.mxu0 0.0
    %82 = vmatpush1.msra.mxu0 0.0
    %83 = vmatprep.subr.mxu0 0.0
    %84 = vmatpush1.msra.mxu0 0.0
    %85 = vmatprep.subr.mxu0 0.0
    %86 = vmatpush1.msra.mxu0 0.0
    %87 = vmatprep.subr.mxu0 0.0
    %88 = vmatpush1.msra.mxu0 0.0
    %89 = vmatprep.subr.mxu0 0.0
    %90 = vmatpush1.msra.mxu0 0.0
    %91 = vmatprep.subr.mxu0 0.0
    %92 = vmatpush1.msra.mxu0 0.0
    %93 = vmatprep.subr.mxu0 0.0
    %94 = vmatpush1.msra.mxu0 0.0
    %95 = vmatprep.subr.mxu0 0.0
    %96 = vmatpush1.msra.mxu0 0.0
    %97 = vmatprep.subr.mxu0 0.0
    %98 = vmatpush1.msra.mxu0 0.0
    %99 = vmatprep.subr.mxu0 0.0
    %100 = vmatpush1.msra.mxu0 0.0
    %101 = vmatprep.subr.mxu0 0.0
    %102 = vmatpush1.msra.mxu0 0.0
    %103 = vmatprep.subr.mxu0 0.0
    %104 = vmatpush1.msra.mxu0 0.0
    %105 = vmatprep.subr.mxu0 0.0
    %106 = vmatpush1.msra.mxu0 0.0
    %107 = vmatprep.subr.mxu0 0.0
    %108 = vmatpush1.msra.mxu0 0.0
    %109 = vmatprep.subr.mxu0 0.0
    %110 = vmatpush1.msra.mxu0 0.0
    %111 = vmatprep.subr.mxu0 0.0
    %112 = vmatpush1.msra.mxu0 0.0
    %113 = vmatprep.subr.mxu0 0.0
    %114 = vmatpush1.msra.mxu0 0.0
    %115 = vmatprep.subr.mxu0 0.0
    %116 = vmatpush1.msra.mxu0 0.0
    %117 = vmatprep.subr.mxu0 0.0
    %118 = vmatpush1.msra.mxu0 0.0
    %119 = vmatprep.subr.mxu0 0.0
    %120 = vmatpush1.msra.mxu0 0.0
    %121 = vmatprep.subr.mxu0 0.0
    %122 = vmatpush1.msra.mxu0 0.0
    %123 = vmatprep.subr.mxu0 0.0
    %124 = vmatpush1.msra.mxu0 0.0
    %125 = vmatprep.subr.mxu0 0.0
    %126 = vmatpush1.msra.mxu0 0.0
    %127 = vmatprep.subr.mxu0 0.0
    %128 = vmatpush1.msra.mxu0 0.0
    %129 = vmatprep.subr.mxu0 0.0
    %130 = vmatpush1.msra.mxu0 0.0
    %131 = vmatprep.subr.mxu0 0.0
    %132 = vmatpush1.msra.mxu0 0.0
    %133 = vmatprep.mubr.f32.mxu0 0.0
    %134 = vmatmul.mubr.f32.gmra.mrb[0].mxu0 %v58
    %v135 = vpop.f32.mrb[0].mxu0
    %v136 = vadd.f32 0.0, %v135
    %v137 = vpop.f32.mrb[0].mxu0
    %v138 = vadd.f32 0.0, %v137
    %139 = vmatprep.mubr.f32.mxu0 0.0
    %140 = vmatmul.mubr.f32.gmra.mrb[0].mxu0 %v61
    %v141 = vpop.f32.mrb[0].mxu0
    %v142 = vadd.f32 0.0, %v141
    %v143 = vpop.f32.mrb[0].mxu0
    %v144 = vadd.f32 0.0, %v143
    %145 = vmatprep.mubr.f32.mxu0 0.0
    %146 = vmatmul.mubr.f32.gmra.mrb[0].mxu0 %v64
    %v147 = vpop.f32.mrb[0].mxu0
    %v148 = vpop.f32.mrb[0].mxu0
    %149 = vmatprep.mubr.f32.mxu0 0.0
    %150 = vmatmul.mubr.f32.gmra.mrb[0].mxu0 %v67
    %v151 = vpop.f32.mrb[0].mxu0
    %v152 = vpop.f32.mrb[0].mxu0
    %153 = vdwg.mxu0
    %154 = vmatprep.subr.mxu0 %v43
    %155 = vmatpush1.msra.mxu0 %v42
    %156 = vmatprep.subr.mxu0 %v47
    %157 = vmatpush1.msra.mxu0 %v46
    %158 = vmatprep.subr.mxu0 %v51
    %159 = vmatpush1.msra.mxu0 %v50
    %160 = vmatprep.subr.mxu0 %v55
    %161 = vmatpush1.msra.mxu0 %v54
    %162 = vmatprep.subr.mxu0 0.0
    %163 = vmatpush1.msra.mxu0 0.0
    %164 = vmatprep.subr.mxu0 0.0
    %165 = vmatpush1.msra.mxu0 0.0
    %166 = vmatprep.subr.mxu0 0.0
    %167 = vmatpush1.msra.mxu0 0.0
    %168 = vmatprep.subr.mxu0 0.0
    %169 = vmatpush1.msra.mxu0 0.0
    %170 = vmatprep.subr.mxu0 0.0
    %171 = vmatpush1.msra.mxu0 0.0
    %172 = vmatprep.subr.mxu0 0.0
    %173 = vmatpush1.msra.mxu0 0.0
    %174 = vmatprep.subr.mxu0 0.0
    %175 = vmatpush1.msra.mxu0 0.0
    %176 = vmatprep.subr.mxu0 0.0
    %177 = vmatpush1.msra.mxu0 0.0
    %178 = vmatprep.subr.mxu0 0.0
    %179 = vmatpush1.msra.mxu0 0.0
    %180 = vmatprep.subr.mxu0 0.0
    %181 = vmatpush1.msra.mxu0 0.0
    %182 = vmatprep.subr.mxu0 0.0
    %183 = vmatpush1.msra.mxu0 0.0
    %184 = vmatprep.subr.mxu0 0.0
    %185 = vmatpush1.msra.mxu0 0.0
    %186 = vmatprep.subr.mxu0 0.0
    %187 = vmatpush1.msra.mxu0 0.0
    %188 = vmatprep.subr.mxu0 0.0
    %189 = vmatpush1.msra.mxu0 0.0
    %190 = vmatprep.subr.mxu0 0.0
    %191 = vmatpush1.msra.mxu0 0.0
    %192 = vmatprep.subr.mxu0 0.0
    %193 = vmatpush1.msra.mxu0 0.0
    %194 = vmatprep.subr.mxu0 0.0
    %195 = vmatpush1.msra.mxu0 0.0
    %196 = vmatprep.subr.mxu0 0.0
    %197 = vmatpush1.msra.mxu0 0.0
    %198 = vmatprep.subr.mxu0 0.0
    %199 = vmatpush1.msra.mxu0 0.0
    %200 = vmatprep.subr.mxu0 0.0
    %201 = vmatpush1.msra.mxu0 0.0
    %202 = vmatprep.subr.mxu0 0.0
    %203 = vmatpush1.msra.mxu0 0.0
    %204 = vmatprep.subr.mxu0 0.0
    %205 = vmatpush1.msra.mxu0 0.0
    %206 = vmatprep.subr.mxu0 0.0
    %207 = vmatpush1.msra.mxu0 0.0
    %208 = vmatprep.subr.mxu0 0.0
    %209 = vmatpush1.msra.mxu0 0.0
    %210 = vmatprep.subr.mxu0 0.0
    %211 = vmatpush1.msra.mxu0 0.0
    %212 = vmatprep.subr.mxu0 0.0
    %213 = vmatpush1.msra.mxu0 0.0
    %214 = vmatprep.subr.mxu0 0.0
    %215 = vmatpush1.msra.mxu0 0.0
    %216 = vmatprep.subr.mxu0 0.0
    %217 = vmatpush1.msra.mxu0 0.0
    %218 = vmatprep.mubr.f32.mxu0 0.0
    %219 = vmatmul.mubr.f32.gmra.mrb[0].mxu0 %v58
    %v220 = vpop.f32.mrb[0].mxu0
    %v221 = vadd.f32 0.0, %v220
    %v222 = vpop.f32.mrb[0].mxu0
    %223 = vmatprep.mubr.f32.mxu0 0.0
    %224 = vmatmul.mubr.f32.gmra.mrb[0].mxu0 %v61
    %v225 = vpop.f32.mrb[0].mxu0
    %v226 = vadd.f32 0.0, %v225
    %v227 = vpop.f32.mrb[0].mxu0
    %228 = vmatprep.mubr.f32.mxu0 0.0
    %229 = vmatmul.mubr.f32.gmra.mrb[0].mxu0 %v64
    %v230 = vpop.f32.mrb[0].mxu0
    %v231 = vpop.f32.mrb[0].mxu0
    %v232 = vadd.f32 0.0, %v231
    %233 = vmatprep.mubr.f32.mxu0 0.0
    %234 = vmatmul.mubr.f32.gmra.mrb[0].mxu0 %v67
    %v235 = vpop.f32.mrb[0].mxu0
    %v236 = vpop.f32.mrb[0].mxu0
    %v237 = vadd.f32 0.0, %v236
    %238 = vdwg.mxu0
    %v239 = vld [vmem:[#allocation2 + $0x60] sm:$0xff]
    %v241 = vsel %vm56, %v136, 0
    %v244 = vsel %vm56, %v142, 0
    %246 = vmatprep.subr.mxu0 0.0
    %247 = vmatpush1.xpose.msra.mxu0 %v58
    %248 = vmatprep.subr.mxu0 0.0
    %249 = vmatpush1.xpose.msra.mxu0 %v61
    %250 = vmatprep.subr.mxu0 0.0
    %251 = vmatpush1.xpose.msra.mxu0 0.0
    %252 = vmatprep.subr.mxu0 0.0
    %253 = vmatpush1.xpose.msra.mxu0 0.0
    %254 = vmatprep.subr.mxu0 0.0
    %255 = vmatpush1.xpose.msra.mxu0 0.0
    %256 = vmatprep.subr.mxu0 0.0
    %257 = vmatpush1.xpose.msra.mxu0 0.0
    %258 = vmatprep.subr.mxu0 0.0
    %259 = vmatpush1.xpose.msra.mxu0 0.0
    %260 = vmatprep.subr.mxu0 0.0
    %261 = vmatpush1.xpose.msra.mxu0 0.0
    %262 = vmatprep.subr.mxu0 0.0
    %263 = vmatpush1.xpose.msra.mxu0 0.0
    %264 = vmatprep.subr.mxu0 0.0
    %265 = vmatpush1.xpose.msra.mxu0 0.0
    %266 = vmatprep.subr.mxu0 0.0
    %267 = vmatpush1.xpose.msra.mxu0 0.0
    %268 = vmatprep.subr.mxu0 0.0
    %269 = vmatpush1.xpose.msra.mxu0 0.0
    %270 = vmatprep.subr.mxu0 0.0
    %271 = vmatpush1.xpose.msra.mxu0 0.0
    %272 = vmatprep.subr.mxu0 0.0
    %273 = vmatpush1.xpose.msra.mxu0 0.0
    %274 = vmatprep.subr.mxu0 0.0
    %275 = vmatpush1.xpose.msra.mxu0 0.0
    %276 = vmatprep.subr.mxu0 0.0
    %277 = vmatpush1.xpose.msra.mxu0 0.0
    %278 = vmatprep.subr.mxu0 0.0
    %279 = vmatpush1.xpose.msra.mxu0 0.0
    %280 = vmatprep.subr.mxu0 0.0
    %281 = vmatpush1.xpose.msra.mxu0 0.0
    %282 = vmatprep.subr.mxu0 0.0
    %283 = vmatpush1.xpose.msra.mxu0 0.0
    %284 = vmatprep.subr.mxu0 0.0
    %285 = vmatpush1.xpose.msra.mxu0 0.0
    %286 = vmatprep.subr.mxu0 0.0
    %287 = vmatpush1.xpose.msra.mxu0 0.0
    %288 = vmatprep.subr.mxu0 0.0
    %289 = vmatpush1.xpose.msra.mxu0 0.0
    %290 = vmatprep.subr.mxu0 0.0
    %291 = vmatpush1.xpose.msra.mxu0 0.0
    %292 = vmatprep.subr.mxu0 0.0
    %293 = vmatpush1.xpose.msra.mxu0 0.0
    %294 = vmatprep.subr.mxu0 0.0
    %295 = vmatpush1.xpose.msra.mxu0 0.0
    %296 = vmatprep.subr.mxu0 0.0
    %297 = vmatpush1.xpose.msra.mxu0 0.0
    %298 = vmatprep.subr.mxu0 0.0
    %299 = vmatpush1.xpose.msra.mxu0 0.0
    %300 = vmatprep.subr.mxu0 0.0
    %301 = vmatpush1.xpose.msra.mxu0 0.0
    %302 = vmatprep.subr.mxu0 0.0
    %303 = vmatpush1.xpose.msra.mxu0 0.0
    %304 = vmatprep.subr.mxu0 0.0
    %305 = vmatpush1.xpose.msra.mxu0 0.0
    %306 = vmatprep.subr.mxu0 0.0
    %307 = vmatpush1.xpose.msra.mxu0 0.0
    %308 = vmatprep.subr.mxu0 0.0
    %309 = vmatpush1.xpose.msra.mxu0 0.0
    %310 = vmatprep.mubr.f32.mxu0 0.0
    %311 = vmatmul.mubr.f32.gmra.mrb[0].mxu0 %v241
    %v312 = vpop.f32.mrb[0].mxu0
    %v313 = vadd.f32 %v36, %v312
    %v314 = vpop.f32.mrb[0].mxu0
    %315 = vmatprep.mubr.f32.mxu0 0.0
    %316 = vmatmul.mubr.f32.gmra.mrb[0].mxu0 %v244
    %v317 = vpop.f32.mrb[0].mxu0
    %v318 = vadd.f32 %v37, %v317
    %v319 = vpop.f32.mrb[0].mxu0
    %320 = vdwg.mxu0
    %vm321 = vcmask 130048
    %v322 = vsel %vm321, %v313, -inf
    %323 = vmax.xlane.f32.xlu0 %v322
    %v324 = vpop.xlane.xlu0 %323
    %v325 = vsel %vm321, %v318, -inf
    %326 = vmax.xlane.f32.xlu0 %v325
    %v327 = vpop.xlane.xlu0 %326
    %v328 = vsub.f32 %v313, %v324
    %v329 = vsub.f32 %v318, %v327
    %v330 = vmul.f32 %v328, 1.442695
    %v331 = vpow.pop %v330
    %v332 = vmul.f32 %v329, 1.442695
    %v333 = vpow.pop %v332
    %v334 = vsel %vm321, %v331, 0.0
    %335 = vadd.xlane.f32.xlu0 %v334
    %v336 = vpop.xlane.xlu0 %335
    %v337 = vsel %vm321, %v333, 0.0
    %338 = vadd.xlane.f32.xlu0 %v337
    %v339 = vpop.xlane.xlu0 %338
    %v340 = vrcp.pop %v336
    %v341 = vrcp.pop %v339
    %v342 = vmul.f32 %v331, %v340
    %v343 = vmul.f32 %v333, %v341
    %344 = vrot.lane.b32.xlu0 %v136, 96
    %v345 = vpop.permute.xlu0 %344
    %346 = vrot.lane.b32.xlu0 %v142, 96
    %v347 = vpop.permute.xlu0 %346
    %v348 = vsel %vm56, %v345, 0
    %v350 = vsel %vm56, %v347, 0
    %352 = vmatprep.subr.mxu0 0.0
    %353 = vmatpush1.xpose.msra.mxu0 %v58
    %354 = vmatprep.subr.mxu0 0.0
    %355 = vmatpush1.xpose.msra.mxu0 %v61
    %356 = vmatprep.subr.mxu0 0.0
    %357 = vmatpush1.xpose.msra.mxu0 0.0
    %358 = vmatprep.subr.mxu0 0.0
    %359 = vmatpush1.xpose.msra.mxu0 0.0
    %360 = vmatprep.subr.mxu0 0.0
    %361 = vmatpush1.xpose.msra.mxu0 0.0
    %362 = vmatprep.subr.mxu0 0.0
    %363 = vmatpush1.xpose.msra.mxu0 0.0
    %364 = vmatprep.subr.mxu0 0.0
    %365 = vmatpush1.xpose.msra.mxu0 0.0
    %366 = vmatprep.subr.mxu0 0.0
    %367 = vmatpush1.xpose.msra.mxu0 0.0
    %368 = vmatprep.subr.mxu0 0.0
    %369 = vmatpush1.xpose.msra.mxu0 0.0
    %370 = vmatprep.subr.mxu0 0.0
    %371 = vmatpush1.xpose.msra.mxu0 0.0
    %372 = vmatprep.subr.mxu0 0.0
    %373 = vmatpush1.xpose.msra.mxu0 0.0
    %374 = vmatprep.subr.mxu0 0.0
    %375 = vmatpush1.xpose.msra.mxu0 0.0
    %376 = vmatprep.subr.mxu0 0.0
    %377 = vmatpush1.xpose.msra.mxu0 0.0
    %378 = vmatprep.subr.mxu0 0.0
    %379 = vmatpush1.xpose.msra.mxu0 0.0
    %380 = vmatprep.subr.mxu0 0.0
    %381 = vmatpush1.xpose.msra.mxu0 0.0
    %382 = vmatprep.subr.mxu0 0.0
    %383 = vmatpush1.xpose.msra.mxu0 0.0
    %384 = vmatprep.subr.mxu0 0.0
    %385 = vmatpush1.xpose.msra.mxu0 0.0
    %386 = vmatprep.subr.mxu0 0.0
    %387 = vmatpush1.xpose.msra.mxu0 0.0
    %388 = vmatprep.subr.mxu0 0.0
    %389 = vmatpush1.xpose.msra.mxu0 0.0
    %390 = vmatprep.subr.mxu0 0.0
    %391 = vmatpush1.xpose.msra.mxu0 0.0
    %392 = vmatprep.subr.mxu0 0.0
    %393 = vmatpush1.xpose.msra.mxu0 0.0
    %394 = vmatprep.subr.mxu0 0.0
    %395 = vmatpush1.xpose.msra.mxu0 0.0
    %396 = vmatprep.subr.mxu0 0.0
    %397 = vmatpush1.xpose.msra.mxu0 0.0
    %398 = vmatprep.subr.mxu0 0.0
    %399 = vmatpush1.xpose.msra.mxu0 0.0
    %400 = vmatprep.subr.mxu0 0.0
    %401 = vmatpush1.xpose.msra.mxu0 0.0
    %402 = vmatprep.subr.mxu0 0.0
    %403 = vmatpush1.xpose.msra.mxu0 0.0
    %404 = vmatprep.subr.mxu0 0.0
    %405 = vmatpush1.xpose.msra.mxu0 0.0
    %406 = vmatprep.subr.mxu0 0.0
    %407 = vmatpush1.xpose.msra.mxu0 0.0
    %408 = vmatprep.subr.mxu0 0.0
    %409 = vmatpush1.xpose.msra.mxu0 0.0
    %410 = vmatprep.subr.mxu0 0.0
    %411 = vmatpush1.xpose.msra.mxu0 0.0
    %412 = vmatprep.subr.mxu0 0.0
    %413 = vmatpush1.xpose.msra.mxu0 0.0
    %414 = vmatprep.subr.mxu0 0.0
    %415 = vmatpush1.xpose.msra.mxu0 0.0
    %416 = vmatprep.mubr.f32.mxu0 0.0
    %417 = vmatmul.mubr.f32.gmra.mrb[0].mxu0 %v348
    %v418 = vpop.f32.mrb[0].mxu0
    %v419 = vadd.f32 %v36, %v418
    %v420 = vpop.f32.mrb[0].mxu0
    %421 = vmatprep.mubr.f32.mxu0 0.0
    %422 = vmatmul.mubr.f32.gmra.mrb[0].mxu0 %v350
    %v423 = vpop.f32.mrb[0].mxu0
    %v424 = vadd.f32 %v37, %v423
    %v425 = vpop.f32.mrb[0].mxu0
    %426 = vdwg.mxu0
    %v427 = vsel %vm321, %v419, -inf
    %428 = vmax.xlane.f32.xlu0 %v427
    %v429 = vpop.xlane.xlu0 %428
    %v430 = vsel %vm321, %v424, -inf
    %431 = vmax.xlane.f32.xlu0 %v430
    %v432 = vpop.xlane.xlu0 %431
    %v433 = vsub.f32 %v419, %v429
    %v434 = vsub.f32 %v424, %v432
    %v435 = vmul.f32 %v433, 1.442695
    %v436 = vpow.pop %v435
    %v437 = vmul.f32 %v434, 1.442695
    %v438 = vpow.pop %v437
    %v439 = vsel %vm321, %v436, 0.0
    %440 = vadd.xlane.f32.xlu0 %v439
    %v441 = vpop.xlane.xlu0 %440
    %v442 = vsel %vm321, %v438, 0.0
    %443 = vadd.xlane.f32.xlu0 %v442
    %v444 = vpop.xlane.xlu0 %443
    %v445 = vrcp.pop %v441
    %v446 = vrcp.pop %v444
    %v447 = vmul.f32 %v436, %v445
    %v448 = vmul.f32 %v438, %v446
    %451 = vrot.lane.b32.xlu0 %v138, 96
    %v452 = vpop.permute.xlu0 %451
    %453 = vrot.lane.b32.xlu0 %v144, 96
    %v454 = vpop.permute.xlu0 %453
    %v458 = vsel %vm321, %v447, 0
    %v461 = vsel %vm321, %v448, 0
    %463 = vmatprep.subr.mxu0 0.0
    %464 = vmatpush1.msra.mxu0 %v452
    %465 = vmatprep.subr.mxu0 0.0
    %466 = vmatpush1.msra.mxu0 %v454
    %467 = vmatprep.subr.mxu0 0.0
    %468 = vmatpush1.msra.mxu0 0.0
    %469 = vmatprep.subr.mxu0 0.0
    %470 = vmatpush1.msra.mxu0 0.0
    %471 = vmatprep.subr.mxu0 0.0
    %472 = vmatpush1.msra.mxu0 0.0
    %473 = vmatprep.subr.mxu0 0.0
    %474 = vmatpush1.msra.mxu0 0.0
    %475 = vmatprep.subr.mxu0 0.0
    %476 = vmatpush1.msra.mxu0 0.0
    %477 = vmatprep.subr.mxu0 0.0
    %478 = vmatpush1.msra.mxu0 0.0
    %479 = vmatprep.subr.mxu0 0.0
    %480 = vmatpush1.msra.mxu0 0.0
    %481 = vmatprep.subr.mxu0 0.0
    %482 = vmatpush1.msra.mxu0 0.0
    %483 = vmatprep.subr.mxu0 0.0
    %484 = vmatpush1.msra.mxu0 0.0
    %485 = vmatprep.subr.mxu0 0.0
    %486 = vmatpush1.msra.mxu0 0.0
    %487 = vmatprep.subr.mxu0 0.0
    %488 = vmatpush1.msra.mxu0 0.0
    %489 = vmatprep.subr.mxu0 0.0
    %490 = vmatpush1.msra.mxu0 0.0
    %491 = vmatprep.subr.mxu0 0.0
    %492 = vmatpush1.msra.mxu0 0.0
    %493 = vmatprep.subr.mxu0 0.0
    %494 = vmatpush1.msra.mxu0 0.0
    %495 = vmatprep.subr.mxu0 0.0
    %496 = vmatpush1.msra.mxu0 0.0
    %497 = vmatprep.subr.mxu0 0.0
    %498 = vmatpush1.msra.mxu0 0.0
    %499 = vmatprep.subr.mxu0 0.0
    %500 = vmatpush1.msra.mxu0 0.0
    %501 = vmatprep.subr.mxu0 0.0
    %502 = vmatpush1.msra.mxu0 0.0
    %503 = vmatprep.subr.mxu0 0.0
    %504 = vmatpush1.msra.mxu0 0.0
    %505 = vmatprep.subr.mxu0 0.0
    %506 = vmatpush1.msra.mxu0 0.0
    %507 = vmatprep.subr.mxu0 0.0
    %508 = vmatpush1.msra.mxu0 0.0
    %509 = vmatprep.subr.mxu0 0.0
    %510 = vmatpush1.msra.mxu0 0.0
    %511 = vmatprep.subr.mxu0 0.0
    %512 = vmatpush1.msra.mxu0 0.0
    %513 = vmatprep.subr.mxu0 0.0
    %514 = vmatpush1.msra.mxu0 0.0
    %515 = vmatprep.subr.mxu0 0.0
    %516 = vmatpush1.msra.mxu0 0.0
    %517 = vmatprep.subr.mxu0 0.0
    %518 = vmatpush1.msra.mxu0 0.0
    %519 = vmatprep.subr.mxu0 0.0
    %520 = vmatpush1.msra.mxu0 0.0
    %521 = vmatprep.subr.mxu0 0.0
    %522 = vmatpush1.msra.mxu0 0.0
    %523 = vmatprep.subr.mxu0 0.0
    %524 = vmatpush1.msra.mxu0 0.0
    %525 = vmatprep.subr.mxu0 0.0
    %526 = vmatpush1.msra.mxu0 0.0
    %527 = vmatprep.mubr.f32.mxu0 0.0
    %528 = vmatmul.mubr.f32.gmra.mrb[0].mxu0 %v458
    %v529 = vpop.f32.mrb[0].mxu0
    %v530 = vadd.f32 0.0, %v529
    %v531 = vpop.f32.mrb[0].mxu0
    %532 = vmatprep.mubr.f32.mxu0 0.0
    %533 = vmatmul.mubr.f32.gmra.mrb[0].mxu0 %v461
    %v534 = vpop.f32.mrb[0].mxu0
    %v535 = vadd.f32 0.0, %v534
    %v536 = vpop.f32.mrb[0].mxu0
    %537 = vdwg.mxu0
    %v539 = vsel %vm321, %v342, 0
    %v542 = vsel %vm321, %v343, 0
    %544 = vmatprep.subr.mxu0 0.0
    %545 = vmatpush1.msra.mxu0 %v138
    %546 = vmatprep.subr.mxu0 0.0
    %547 = vmatpush1.msra.mxu0 %v144
    %548 = vmatprep.subr.mxu0 0.0
    %549 = vmatpush1.msra.mxu0 0.0
    %550 = vmatprep.subr.mxu0 0.0
    %551 = vmatpush1.msra.mxu0 0.0
    %552 = vmatprep.subr.mxu0 0.0
    %553 = vmatpush1.msra.mxu0 0.0
    %554 = vmatprep.subr.mxu0 0.0
    %555 = vmatpush1.msra.mxu0 0.0
    %556 = vmatprep.subr.mxu0 0.0
    %557 = vmatpush1.msra.mxu0 0.0
    %558 = vmatprep.subr.mxu0 0.0
    %559 = vmatpush1.msra.mxu0 0.0
    %560 = vmatprep.subr.mxu0 0.0
    %561 = vmatpush1.msra.mxu0 0.0
    %562 = vmatprep.subr.mxu0 0.0
    %563 = vmatpush1.msra.mxu0 0.0
    %564 = vmatprep.subr.mxu0 0.0
    %565 = vmatpush1.msra.mxu0 0.0
    %566 = vmatprep.subr.mxu0 0.0
    %567 = vmatpush1.msra.mxu0 0.0
    %568 = vmatprep.subr.mxu0 0.0
    %569 = vmatpush1.msra.mxu0 0.0
    %570 = vmatprep.subr.mxu0 0.0
    %571 = vmatpush1.msra.mxu0 0.0
    %572 = vmatprep.subr.mxu0 0.0
    %573 = vmatpush1.msra.mxu0 0.0
    %574 = vmatprep.subr.mxu0 0.0
    %575 = vmatpush1.msra.mxu0 0.0
    %576 = vmatprep.subr.mxu0 0.0
    %577 = vmatpush1.msra.mxu0 0.0
    %578 = vmatprep.subr.mxu0 0.0
    %579 = vmatpush1.msra.mxu0 0.0
    %580 = vmatprep.subr.mxu0 0.0
    %581 = vmatpush1.msra.mxu0 0.0
    %582 = vmatprep.subr.mxu0 0.0
    %583 = vmatpush1.msra.mxu0 0.0
    %584 = vmatprep.subr.mxu0 0.0
    %585 = vmatpush1.msra.mxu0 0.0
    %586 = vmatprep.subr.mxu0 0.0
    %587 = vmatpush1.msra.mxu0 0.0
    %588 = vmatprep.subr.mxu0 0.0
    %589 = vmatpush1.msra.mxu0 0.0
    %590 = vmatprep.subr.mxu0 0.0
    %591 = vmatpush1.msra.mxu0 0.0
    %592 = vmatprep.subr.mxu0 0.0
    %593 = vmatpush1.msra.mxu0 0.0
    %594 = vmatprep.subr.mxu0 0.0
    %595 = vmatpush1.msra.mxu0 0.0
    %596 = vmatprep.subr.mxu0 0.0
    %597 = vmatpush1.msra.mxu0 0.0
    %598 = vmatprep.subr.mxu0 0.0
    %599 = vmatpush1.msra.mxu0 0.0
    %600 = vmatprep.subr.mxu0 0.0
    %601 = vmatpush1.msra.mxu0 0.0
    %602 = vmatprep.subr.mxu0 0.0
    %603 = vmatpush1.msra.mxu0 0.0
    %604 = vmatprep.subr.mxu0 0.0
    %605 = vmatpush1.msra.mxu0 0.0
    %606 = vmatprep.subr.mxu0 0.0
    %607 = vmatpush1.msra.mxu0 0.0
    %608 = vmatprep.mubr.f32.mxu0 0.0
    %609 = vmatmul.mubr.f32.gmra.mrb[0].mxu0 %v539
    %v610 = vpop.f32.mrb[0].mxu0
    %v611 = vadd.f32 %v530, %v610
    %v612 = vpop.f32.mrb[0].mxu0
    %613 = vmatprep.mubr.f32.mxu0 0.0
    %614 = vmatmul.mubr.f32.gmra.mrb[0].mxu0 %v542
    %v615 = vpop.f32.mrb[0].mxu0
    %v616 = vadd.f32 %v535, %v615
    %v617 = vpop.f32.mrb[0].mxu0
    %618 = vdwg.mxu0
    %619 = vrot.lane.b32.xlu0 %v136, 64
    %v620 = vpop.permute.xlu0 %619
    %621 = vrot.lane.b32.xlu0 %v142, 64
    %v622 = vpop.permute.xlu0 %621
    %v623 = vsel %vm56, %v620, 0
    %v625 = vsel %vm56, %v622, 0
    %627 = vmatprep.subr.mxu0 0.0
    %628 = vmatpush1.xpose.msra.mxu0 %v58
    %629 = vmatprep.subr.mxu0 0.0
    %630 = vmatpush1.xpose.msra.mxu0 %v61
    %631 = vmatprep.subr.mxu0 0.0
    %632 = vmatpush1.xpose.msra.mxu0 0.0
    %633 = vmatprep.subr.mxu0 0.0
    %634 = vmatpush1.xpose.msra.mxu0 0.0
    %635 = vmatprep.subr.mxu0 0.0
    %636 = vmatpush1.xpose.msra.mxu0 0.0
    %637 = vmatprep.subr.mxu0 0.0
    %638 = vmatpush1.xpose.msra.mxu0 0.0
    %639 = vmatprep.subr.mxu0 0.0
    %640 = vmatpush1.xpose.msra.mxu0 0.0
    %641 = vmatprep.subr.mxu0 0.0
    %642 = vmatpush1.xpose.msra.mxu0 0.0
    %643 = vmatprep.subr.mxu0 0.0
    %644 = vmatpush1.xpose.msra.mxu0 0.0
    %645 = vmatprep.subr.mxu0 0.0
    %646 = vmatpush1.xpose.msra.mxu0 0.0
    %647 = vmatprep.subr.mxu0 0.0
    %648 = vmatpush1.xpose.msra.mxu0 0.0
    %649 = vmatprep.subr.mxu0 0.0
    %650 = vmatpush1.xpose.msra.mxu0 0.0
    %651 = vmatprep.subr.mxu0 0.0
    %652 = vmatpush1.xpose.msra.mxu0 0.0
    %653 = vmatprep.subr.mxu0 0.0
    %654 = vmatpush1.xpose.msra.mxu0 0.0
    %655 = vmatprep.subr.mxu0 0.0
    %656 = vmatpush1.xpose.msra.mxu0 0.0
    %657 = vmatprep.subr.mxu0 0.0
    %658 = vmatpush1.xpose.msra.mxu0 0.0
    %659 = vmatprep.subr.mxu0 0.0
    %660 = vmatpush1.xpose.msra.mxu0 0.0
    %661 = vmatprep.subr.mxu0 0.0
    %662 = vmatpush1.xpose.msra.mxu0 0.0
    %663 = vmatprep.subr.mxu0 0.0
    %664 = vmatpush1.xpose.msra.mxu0 0.0
    %665 = vmatprep.subr.mxu0 0.0
    %666 = vmatpush1.xpose.msra.mxu0 0.0
    %667 = vmatprep.subr.mxu0 0.0
    %668 = vmatpush1.xpose.msra.mxu0 0.0
    %669 = vmatprep.subr.mxu0 0.0
    %670 = vmatpush1.xpose.msra.mxu0 0.0
    %671 = vmatprep.subr.mxu0 0.0
    %672 = vmatpush1.xpose.msra.mxu0 0.0
    %673 = vmatprep.subr.mxu0 0.0
    %674 = vmatpush1.xpose.msra.mxu0 0.0
    %675 = vmatprep.subr.mxu0 0.0
    %676 = vmatpush1.xpose.msra.mxu0 0.0
    %677 = vmatprep.subr.mxu0 0.0
    %678 = vmatpush1.xpose.msra.mxu0 0.0
    %679 = vmatprep.subr.mxu0 0.0
    %680 = vmatpush1.xpose.msra.mxu0 0.0
    %681 = vmatprep.subr.mxu0 0.0
    %682 = vmatpush1.xpose.msra.mxu0 0.0
    %683 = vmatprep.subr.mxu0 0.0
    %684 = vmatpush1.xpose.msra.mxu0 0.0
    %685 = vmatprep.subr.mxu0 0.0
    %686 = vmatpush1.xpose.msra.mxu0 0.0
    %687 = vmatprep.subr.mxu0 0.0
    %688 = vmatpush1.xpose.msra.mxu0 0.0
    %689 = vmatprep.subr.mxu0 0.0
    %690 = vmatpush1.xpose.msra.mxu0 0.0
    %691 = vmatprep.mubr.f32.mxu0 0.0
    %692 = vmatmul.mubr.f32.gmra.mrb[0].mxu0 %v623
    %v693 = vpop.f32.mrb[0].mxu0
    %v694 = vadd.f32 %v36, %v693
    %v695 = vpop.f32.mrb[0].mxu0
    %696 = vmatprep.mubr.f32.mxu0 0.0
    %697 = vmatmul.mubr.f32.gmra.mrb[0].mxu0 %v625
    %v698 = vpop.f32.mrb[0].mxu0
    %v699 = vadd.f32 %v37, %v698
    %v700 = vpop.f32.mrb[0].mxu0
    %701 = vdwg.mxu0
    %v702 = vsel %vm321, %v694, -inf
    %703 = vmax.xlane.f32.xlu0 %v702
    %v704 = vpop.xlane.xlu0 %703
    %v705 = vsel %vm321, %v699, -inf
    %706 = vmax.xlane.f32.xlu0 %v705
    %v707 = vpop.xlane.xlu0 %706
    %v708 = vsub.f32 %v694, %v704
    %v709 = vsub.f32 %v699, %v707
    %v710 = vmul.f32 %v708, 1.442695
    %v711 = vpow.pop %v710
    %v712 = vmul.f32 %v709, 1.442695
    %v713 = vpow.pop %v712
    %v714 = vsel %vm321, %v711, 0.0
    %715 = vadd.xlane.f32.xlu0 %v714
    %v716 = vpop.xlane.xlu0 %715
    %v717 = vsel %vm321, %v713, 0.0
    %718 = vadd.xlane.f32.xlu0 %v717
    %v719 = vpop.xlane.xlu0 %718
    %v720 = vrcp.pop %v716
    %v721 = vrcp.pop %v719
    %v722 = vmul.f32 %v711, %v720
    %v723 = vmul.f32 %v713, %v721
    %724 = vrot.lane.b32.xlu0 %v138, 64
    %v725 = vpop.permute.xlu0 %724
    %726 = vrot.lane.b32.xlu0 %v144, 64
    %v727 = vpop.permute.xlu0 %726
    %v731 = vsel %vm321, %v722, 0
    %v734 = vsel %vm321, %v723, 0
    %736 = vmatprep.subr.mxu0 0.0
    %737 = vmatpush1.msra.mxu0 %v725
    %738 = vmatprep.subr.mxu0 0.0
    %739 = vmatpush1.msra.mxu0 %v727
    %740 = vmatprep.subr.mxu0 0.0
    %741 = vmatpush1.msra.mxu0 0.0
    %742 = vmatprep.subr.mxu0 0.0
    %743 = vmatpush1.msra.mxu0 0.0
    %744 = vmatprep.subr.mxu0 0.0
    %745 = vmatpush1.msra.mxu0 0.0
    %746 = vmatprep.subr.mxu0 0.0
    %747 = vmatpush1.msra.mxu0 0.0
    %748 = vmatprep.subr.mxu0 0.0
    %749 = vmatpush1.msra.mxu0 0.0
    %750 = vmatprep.subr.mxu0 0.0
    %751 = vmatpush1.msra.mxu0 0.0
    %752 = vmatprep.subr.mxu0 0.0
    %753 = vmatpush1.msra.mxu0 0.0
    %754 = vmatprep.subr.mxu0 0.0
    %755 = vmatpush1.msra.mxu0 0.0
    %756 = vmatprep.subr.mxu0 0.0
    %757 = vmatpush1.msra.mxu0 0.0
    %758 = vmatprep.subr.mxu0 0.0
    %759 = vmatpush1.msra.mxu0 0.0
    %760 = vmatprep.subr.mxu0 0.0
    %761 = vmatpush1.msra.mxu0 0.0
    %762 = vmatprep.subr.mxu0 0.0
    %763 = vmatpush1.msra.mxu0 0.0
    %764 = vmatprep.subr.mxu0 0.0
    %765 = vmatpush1.msra.mxu0 0.0
    %766 = vmatprep.subr.mxu0 0.0
    %767 = vmatpush1.msra.mxu0 0.0
    %768 = vmatprep.subr.mxu0 0.0
    %769 = vmatpush1.msra.mxu0 0.0
    %770 = vmatprep.subr.mxu0 0.0
    %771 = vmatpush1.msra.mxu0 0.0
    %772 = vmatprep.subr.mxu0 0.0
    %773 = vmatpush1.msra.mxu0 0.0
    %774 = vmatprep.subr.mxu0 0.0
    %775 = vmatpush1.msra.mxu0 0.0
    %776 = vmatprep.subr.mxu0 0.0
    %777 = vmatpush1.msra.mxu0 0.0
    %778 = vmatprep.subr.mxu0 0.0
    %779 = vmatpush1.msra.mxu0 0.0
    %780 = vmatprep.subr.mxu0 0.0
    %781 = vmatpush1.msra.mxu0 0.0
    %782 = vmatprep.subr.mxu0 0.0
    %783 = vmatpush1.msra.mxu0 0.0
    %784 = vmatprep.subr.mxu0 0.0
    %785 = vmatpush1.msra.mxu0 0.0
    %786 = vmatprep.subr.mxu0 0.0
    %787 = vmatpush1.msra.mxu0 0.0
    %788 = vmatprep.subr.mxu0 0.0
    %789 = vmatpush1.msra.mxu0 0.0
    %790 = vmatprep.subr.mxu0 0.0
    %791 = vmatpush1.msra.mxu0 0.0
    %792 = vmatprep.subr.mxu0 0.0
    %793 = vmatpush1.msra.mxu0 0.0
    %794 = vmatprep.subr.mxu0 0.0
    %795 = vmatpush1.msra.mxu0 0.0
    %796 = vmatprep.subr.mxu0 0.0
    %797 = vmatpush1.msra.mxu0 0.0
    %798 = vmatprep.subr.mxu0 0.0
    %799 = vmatpush1.msra.mxu0 0.0
    %800 = vmatprep.mubr.f32.mxu0 0.0
    %801 = vmatmul.mubr.f32.gmra.mrb[0].mxu0 %v731
    %v802 = vpop.f32.mrb[0].mxu0
    %v803 = vadd.f32 0.0, %v802
    %v804 = vpop.f32.mrb[0].mxu0
    %805 = vmatprep.mubr.f32.mxu0 0.0
    %806 = vmatmul.mubr.f32.gmra.mrb[0].mxu0 %v734
    %v807 = vpop.f32.mrb[0].mxu0
    %v808 = vadd.f32 0.0, %v807
    %v809 = vpop.f32.mrb[0].mxu0
    %810 = vdwg.mxu0
    %v811 = vadd.f32 %v611, %v803
    %v812 = vadd.f32 %v616, %v808
    %813 = vrot.lane.b32.xlu0 %v136, 32
    %v814 = vpop.permute.xlu0 %813
    %815 = vrot.lane.b32.xlu0 %v142, 32
    %v816 = vpop.permute.xlu0 %815
    %v817 = vsel %vm56, %v814, 0
    %v819 = vsel %vm56, %v816, 0
    %821 = vmatprep.subr.mxu0 0.0
    %822 = vmatpush1.xpose.msra.mxu0 %v58
    %823 = vmatprep.subr.mxu0 0.0
    %824 = vmatpush1.xpose.msra.mxu0 %v61
    %825 = vmatprep.subr.mxu0 0.0
    %826 = vmatpush1.xpose.msra.mxu0 0.0
    %827 = vmatprep.subr.mxu0 0.0
    %828 = vmatpush1.xpose.msra.mxu0 0.0
    %829 = vmatprep.subr.mxu0 0.0
    %830 = vmatpush1.xpose.msra.mxu0 0.0
    %831 = vmatprep.subr.mxu0 0.0
    %832 = vmatpush1.xpose.msra.mxu0 0.0
    %833 = vmatprep.subr.mxu0 0.0
    %834 = vmatpush1.xpose.msra.mxu0 0.0
    %835 = vmatprep.subr.mxu0 0.0
    %836 = vmatpush1.xpose.msra.mxu0 0.0
    %837 = vmatprep.subr.mxu0 0.0
    %838 = vmatpush1.xpose.msra.mxu0 0.0
    %839 = vmatprep.subr.mxu0 0.0
    %840 = vmatpush1.xpose.msra.mxu0 0.0
    %841 = vmatprep.subr.mxu0 0.0
    %842 = vmatpush1.xpose.msra.mxu0 0.0
    %843 = vmatprep.subr.mxu0 0.0
    %844 = vmatpush1.xpose.msra.mxu0 0.0
    %845 = vmatprep.subr.mxu0 0.0
    %846 = vmatpush1.xpose.msra.mxu0 0.0
    %847 = vmatprep.subr.mxu0 0.0
    %848 = vmatpush1.xpose.msra.mxu0 0.0
    %849 = vmatprep.subr.mxu0 0.0
    %850 = vmatpush1.xpose.msra.mxu0 0.0
    %851 = vmatprep.subr.mxu0 0.0
    %852 = vmatpush1.xpose.msra.mxu0 0.0
    %853 = vmatprep.subr.mxu0 0.0
    %854 = vmatpush1.xpose.msra.mxu0 0.0
    %855 = vmatprep.subr.mxu0 0.0
    %856 = vmatpush1.xpose.msra.mxu0 0.0
    %857 = vmatprep.subr.mxu0 0.0
    %858 = vmatpush1.xpose.msra.mxu0 0.0
    %859 = vmatprep.subr.mxu0 0.0
    %860 = vmatpush1.xpose.msra.mxu0 0.0
    %861 = vmatprep.subr.mxu0 0.0
    %862 = vmatpush1.xpose.msra.mxu0 0.0
    %863 = vmatprep.subr.mxu0 0.0
    %864 = vmatpush1.xpose.msra.mxu0 0.0
    %865 = vmatprep.subr.mxu0 0.0
    %866 = vmatpush1.xpose.msra.mxu0 0.0
    %867 = vmatprep.subr.mxu0 0.0
    %868 = vmatpush1.xpose.msra.mxu0 0.0
    %869 = vmatprep.subr.mxu0 0.0
    %870 = vmatpush1.xpose.msra.mxu0 0.0
    %871 = vmatprep.subr.mxu0 0.0
    %872 = vmatpush1.xpose.msra.mxu0 0.0
    %873 = vmatprep.subr.mxu0 0.0
    %874 = vmatpush1.xpose.msra.mxu0 0.0
    %875 = vmatprep.subr.mxu0 0.0
    %876 = vmatpush1.xpose.msra.mxu0 0.0
    %877 = vmatprep.subr.mxu0 0.0
    %878 = vmatpush1.xpose.msra.mxu0 0.0
    %879 = vmatprep.subr.mxu0 0.0
    %880 = vmatpush1.xpose.msra.mxu0 0.0
    %881 = vmatprep.subr.mxu0 0.0
    %882 = vmatpush1.xpose.msra.mxu0 0.0
    %883 = vmatprep.subr.mxu0 0.0
    %884 = vmatpush1.xpose.msra.mxu0 0.0
    %885 = vmatprep.mubr.f32.mxu0 0.0
    %886 = vmatmul.mubr.f32.gmra.mrb[0].mxu0 %v817
    %v887 = vpop.f32.mrb[0].mxu0
    %v888 = vadd.f32 %v36, %v887
    %v889 = vpop.f32.mrb[0].mxu0
    %890 = vmatprep.mubr.f32.mxu0 0.0
    %891 = vmatmul.mubr.f32.gmra.mrb[0].mxu0 %v819
    %v892 = vpop.f32.mrb[0].mxu0
    %v893 = vadd.f32 %v37, %v892
    %v894 = vpop.f32.mrb[0].mxu0
    %895 = vdwg.mxu0
    %v896 = vsel %vm321, %v888, -inf
    %897 = vmax.xlane.f32.xlu0 %v896
    %v898 = vpop.xlane.xlu0 %897
    %v899 = vsel %vm321, %v893, -inf
    %900 = vmax.xlane.f32.xlu0 %v899
    %v901 = vpop.xlane.xlu0 %900
    %v902 = vsub.f32 %v888, %v898
    %v903 = vsub.f32 %v893, %v901
    %v904 = vmul.f32 %v902, 1.442695
    %v905 = vpow.pop %v904
    %v906 = vmul.f32 %v903, 1.442695
    %v907 = vpow.pop %v906
    %v908 = vsel %vm321, %v905, 0.0
    %909 = vadd.xlane.f32.xlu0 %v908
    %v910 = vpop.xlane.xlu0 %909
    %v911 = vsel %vm321, %v907, 0.0
    %912 = vadd.xlane.f32.xlu0 %v911
    %v913 = vpop.xlane.xlu0 %912
    %v914 = vrcp.pop %v910
    %v915 = vrcp.pop %v913
    %v916 = vmul.f32 %v905, %v914
    %v917 = vmul.f32 %v907, %v915
    %918 = vrot.lane.b32.xlu0 %v138, 32
    %v919 = vpop.permute.xlu0 %918
    %920 = vrot.lane.b32.xlu0 %v144, 32
    %v921 = vpop.permute.xlu0 %920
    %v925 = vsel %vm321, %v916, 0
    %v928 = vsel %vm321, %v917, 0
    %930 = vmatprep.subr.mxu0 0.0
    %931 = vmatpush1.msra.mxu0 %v919
    %932 = vmatprep.subr.mxu0 0.0
    %933 = vmatpush1.msra.mxu0 %v921
    %934 = vmatprep.subr.mxu0 0.0
    %935 = vmatpush1.msra.mxu0 0.0
    %936 = vmatprep.subr.mxu0 0.0
    %937 = vmatpush1.msra.mxu0 0.0
    %938 = vmatprep.subr.mxu0 0.0
    %939 = vmatpush1.msra.mxu0 0.0
    %940 = vmatprep.subr.mxu0 0.0
    %941 = vmatpush1.msra.mxu0 0.0
    %942 = vmatprep.subr.mxu0 0.0
    %943 = vmatpush1.msra.mxu0 0.0
    %944 = vmatprep.subr.mxu0 0.0
    %945 = vmatpush1.msra.mxu0 0.0
    %946 = vmatprep.subr.mxu0 0.0
    %947 = vmatpush1.msra.mxu0 0.0
    %948 = vmatprep.subr.mxu0 0.0
    %949 = vmatpush1.msra.mxu0 0.0
    %950 = vmatprep.subr.mxu0 0.0
    %951 = vmatpush1.msra.mxu0 0.0
    %952 = vmatprep.subr.mxu0 0.0
    %953 = vmatpush1.msra.mxu0 0.0
    %954 = vmatprep.subr.mxu0 0.0
    %955 = vmatpush1.msra.mxu0 0.0
    %956 = vmatprep.subr.mxu0 0.0
    %957 = vmatpush1.msra.mxu0 0.0
    %958 = vmatprep.subr.mxu0 0.0
    %959 = vmatpush1.msra.mxu0 0.0
    %960 = vmatprep.subr.mxu0 0.0
    %961 = vmatpush1.msra.mxu0 0.0
    %962 = vmatprep.subr.mxu0 0.0
    %963 = vmatpush1.msra.mxu0 0.0
    %964 = vmatprep.subr.mxu0 0.0
    %965 = vmatpush1.msra.mxu0 0.0
    %966 = vmatprep.subr.mxu0 0.0
    %967 = vmatpush1.msra.mxu0 0.0
    %968 = vmatprep.subr.mxu0 0.0
    %969 = vmatpush1.msra.mxu0 0.0
    %970 = vmatprep.subr.mxu0 0.0
    %971 = vmatpush1.msra.mxu0 0.0
    %972 = vmatprep.subr.mxu0 0.0
    %973 = vmatpush1.msra.mxu0 0.0
    %974 = vmatprep.subr.mxu0 0.0
    %975 = vmatpush1.msra.mxu0 0.0
    %976 = vmatprep.subr.mxu0 0.0
    %977 = vmatpush1.msra.mxu0 0.0
    %978 = vmatprep.subr.mxu0 0.0
    %979 = vmatpush1.msra.mxu0 0.0
    %980 = vmatprep.subr.mxu0 0.0
    %981 = vmatpush1.msra.mxu0 0.0
    %982 = vmatprep.subr.mxu0 0.0
    %983 = vmatpush1.msra.mxu0 0.0
    %984 = vmatprep.subr.mxu0 0.0
    %985 = vmatpush1.msra.mxu0 0.0
    %986 = vmatprep.subr.mxu0 0.0
    %987 = vmatpush1.msra.mxu0 0.0
    %988 = vmatprep.subr.mxu0 0.0
    %989 = vmatpush1.msra.mxu0 0.0
    %990 = vmatprep.subr.mxu0 0.0
    %991 = vmatpush1.msra.mxu0 0.0
    %992 = vmatprep.subr.mxu0 0.0
    %993 = vmatpush1.msra.mxu0 0.0
    %994 = vmatprep.mubr.f32.mxu0 0.0
    %995 = vmatmul.mubr.f32.gmra.mrb[0].mxu0 %v925
    %v996 = vpop.f32.mrb[0].mxu0
    %v997 = vadd.f32 0.0, %v996
    %v998 = vpop.f32.mrb[0].mxu0
    %999 = vmatprep.mubr.f32.mxu0 0.0
    %1000 = vmatmul.mubr.f32.gmra.mrb[0].mxu0 %v928
    %v1001 = vpop.f32.mrb[0].mxu0
    %v1002 = vadd.f32 0.0, %v1001
    %v1003 = vpop.f32.mrb[0].mxu0
    %1004 = vdwg.mxu0
    %v1005 = vadd.f32 %v811, %v997
    %v1006 = vadd.f32 %v812, %v1002
    %v1007 = vadd.f32 %v1005, %v32
    %v1008 = vadd.f32 %v1006, %v33
    %v1009 = vsel %vm56, %v1007, 0.0
    %1010 = vadd.xlane.f32.xlu0 %v1009
    %v1011 = vpop.xlane.xlu0 %1010
    %v1012 = vsel %vm56, %v1008, 0.0
    %1013 = vadd.xlane.f32.xlu0 %v1012
    %v1014 = vpop.xlane.xlu0 %1013
    %v1015 = vrcp.pop 32.0
    %v1016 = vmul.f32 %v1011, %v1015
    %v1017 = vmul.f32 %v1014, %v1015
    %v1018 = vsub.f32 %v1007, %v1016
    %v1019 = vsub.f32 %v1008, %v1017
    %v1020 = vmul.f32 %v1018, %v1018
    %v1021 = vmul.f32 %v1019, %v1019
    %v1022 = vsel %vm56, %v1020, 0.0
    %1023 = vadd.xlane.f32.xlu0 %v1022
    %v1024 = vpop.xlane.xlu0 %1023
    %v1025 = vsel %vm56, %v1021, 0.0
    %1026 = vadd.xlane.f32.xlu0 %v1025
    %v1027 = vpop.xlane.xlu0 %1026
    %v1028 = vmul.f32 %v1024, 0.032258064
    %v1029 = vmul.f32 %v1027, 0.032258064
    %v1030 = vadd.f32 %v1028, 1e-12
    %v1031 = vadd.f32 %v1029, 1e-12
    %v1032 = vrsqrt.pop %v1030
    %v1033 = vrsqrt.pop %v1031
    %v1034 = vlaneseq
    %v1035 = vshrl.u32 %v1034, 7
    %v1036 = vsub.s32 2, %v1035
    %v1037 = vrot.slane %v239, %v1036
    %v1038 = vmul.f32 %v1037, %v1018
    %v1039 = vmul.f32 %v1037, %v1019
    %v1040 = vmul.f32 %v1038, %v1032
    %v1041 = vmul.f32 %v1039, %v1033
    %v1042 = vlaneseq
    %v1043 = vshrl.u32 %v1042, 7
    %v1044 = vsub.s32 3, %v1043
    %v1045 = vrot.slane %v239, %v1044
    %v1046 = vadd.f32 %v1040, %v1045
    %v1047 = vadd.f32 %v1041, %v1045
    %v1049 = vsel %vm56, %v221, 0
    %v1052 = vsel %vm56, %v226, 0
    %1054 = vmatprep.subr.mxu0 0.0
    %1055 = vmatpush1.xpose.msra.mxu0 %v64
    %1056 = vmatprep.subr.mxu0 0.0
    %1057 = vmatpush1.xpose.msra.mxu0 %v67
    %1058 = vmatprep.subr.mxu0 0.0
    %1059 = vmatpush1.xpose.msra.mxu0 0.0
    %1060 = vmatprep.subr.mxu0 0.0
    %1061 = vmatpush1.xpose.msra.mxu0 0.0
    %1062 = vmatprep.subr.mxu0 0.0
    %1063 = vmatpush1.xpose.msra.mxu0 0.0
    %1064 = vmatprep.subr.mxu0 0.0
    %1065 = vmatpush1.xpose.msra.mxu0 0.0
    %1066 = vmatprep.subr.mxu0 0.0
    %1067 = vmatpush1.xpose.msra.mxu0 0.0
    %1068 = vmatprep.subr.mxu0 0.0
    %1069 = vmatpush1.xpose.msra.mxu0 0.0
    %1070 = vmatprep.subr.mxu0 0.0
    %1071 = vmatpush1.xpose.msra.mxu0 0.0
    %1072 = vmatprep.subr.mxu0 0.0
    %1073 = vmatpush1.xpose.msra.mxu0 0.0
    %1074 = vmatprep.subr.mxu0 0.0
    %1075 = vmatpush1.xpose.msra.mxu0 0.0
    %1076 = vmatprep.subr.mxu0 0.0
    %1077 = vmatpush1.xpose.msra.mxu0 0.0
    %1078 = vmatprep.subr.mxu0 0.0
    %1079 = vmatpush1.xpose.msra.mxu0 0.0
    %1080 = vmatprep.subr.mxu0 0.0
    %1081 = vmatpush1.xpose.msra.mxu0 0.0
    %1082 = vmatprep.subr.mxu0 0.0
    %1083 = vmatpush1.xpose.msra.mxu0 0.0
    %1084 = vmatprep.subr.mxu0 0.0
    %1085 = vmatpush1.xpose.msra.mxu0 0.0
    %1086 = vmatprep.subr.mxu0 0.0
    %1087 = vmatpush1.xpose.msra.mxu0 0.0
    %1088 = vmatprep.subr.mxu0 0.0
    %1089 = vmatpush1.xpose.msra.mxu0 0.0
    %1090 = vmatprep.subr.mxu0 0.0
    %1091 = vmatpush1.xpose.msra.mxu0 0.0
    %1092 = vmatprep.subr.mxu0 0.0
    %1093 = vmatpush1.xpose.msra.mxu0 0.0
    %1094 = vmatprep.subr.mxu0 0.0
    %1095 = vmatpush1.xpose.msra.mxu0 0.0
    %1096 = vmatprep.subr.mxu0 0.0
    %1097 = vmatpush1.xpose.msra.mxu0 0.0
    %1098 = vmatprep.subr.mxu0 0.0
    %1099 = vmatpush1.xpose.msra.mxu0 0.0
    %1100 = vmatprep.subr.mxu0 0.0
    %1101 = vmatpush1.xpose.msra.mxu0 0.0
    %1102 = vmatprep.subr.mxu0 0.0
    %1103 = vmatpush1.xpose.msra.mxu0 0.0
    %1104 = vmatprep.subr.mxu0 0.0
    %1105 = vmatpush1.xpose.msra.mxu0 0.0
    %1106 = vmatprep.subr.mxu0 0.0
    %1107 = vmatpush1.xpose.msra.mxu0 0.0
    %1108 = vmatprep.subr.mxu0 0.0
    %1109 = vmatpush1.xpose.msra.mxu0 0.0
    %1110 = vmatprep.subr.mxu0 0.0
    %1111 = vmatpush1.xpose.msra.mxu0 0.0
    %1112 = vmatprep.subr.mxu0 0.0
    %1113 = vmatpush1.xpose.msra.mxu0 0.0
    %1114 = vmatprep.subr.mxu0 0.0
    %1115 = vmatpush1.xpose.msra.mxu0 0.0
    %1116 = vmatprep.subr.mxu0 0.0
    %1117 = vmatpush1.xpose.msra.mxu0 0.0
    %1118 = vmatprep.mubr.f32.mxu0 0.0
    %1119 = vmatmul.mubr.f32.gmra.mrb[0].mxu0 %v1049
    %v1120 = vpop.f32.mrb[0].mxu0
    %v1121 = vadd.f32 %v38, %v1120
    %v1122 = vpop.f32.mrb[0].mxu0
    %1123 = vmatprep.mubr.f32.mxu0 0.0
    %1124 = vmatmul.mubr.f32.gmra.mrb[0].mxu0 %v1052
    %v1125 = vpop.f32.mrb[0].mxu0
    %v1126 = vadd.f32 %v39, %v1125
    %v1127 = vpop.f32.mrb[0].mxu0
    %1128 = vdwg.mxu0
    %v1129 = vsel %vm321, %v1121, -inf
    %1130 = vmax.xlane.f32.xlu0 %v1129
    %v1131 = vpop.xlane.xlu0 %1130
    %v1132 = vsel %vm321, %v1126, -inf
    %1133 = vmax.xlane.f32.xlu0 %v1132
    %v1134 = vpop.xlane.xlu0 %1133
    %v1135 = vsub.f32 %v1121, %v1131
    %v1136 = vsub.f32 %v1126, %v1134
    %v1137 = vmul.f32 %v1135, 1.442695
    %v1138 = vpow.pop %v1137
    %v1139 = vmul.f32 %v1136, 1.442695
    %v1140 = vpow.pop %v1139
    %v1141 = vsel %vm321, %v1138, 0.0
    %1142 = vadd.xlane.f32.xlu0 %v1141
    %v1143 = vpop.xlane.xlu0 %1142
    %v1144 = vsel %vm321, %v1140, 0.0
    %1145 = vadd.xlane.f32.xlu0 %v1144
    %v1146 = vpop.xlane.xlu0 %1145
    %v1147 = vrcp.pop %v1143
    %v1148 = vrcp.pop %v1146
    %v1149 = vmul.f32 %v1138, %v1147
    %v1150 = vmul.f32 %v1140, %v1148
    %1151 = vrot.lane.b32.xlu0 %v221, 96
    %v1152 = vpop.permute.xlu0 %1151
    %1153 = vrot.lane.b32.xlu0 %v226, 96
    %v1154 = vpop.permute.xlu0 %1153
    %v1155 = vsel %vm56, %v1152, 0
    %v1157 = vsel %vm56, %v1154, 0
    %1159 = vmatprep.subr.mxu0 0.0
    %1160 = vmatpush1.xpose.msra.mxu0 %v64
    %1161 = vmatprep.subr.mxu0 0.0
    %1162 = vmatpush1.xpose.msra.mxu0 %v67
    %1163 = vmatprep.subr.mxu0 0.0
    %1164 = vmatpush1.xpose.msra.mxu0 0.0
    %1165 = vmatprep.subr.mxu0 0.0
    %1166 = vmatpush1.xpose.msra.mxu0 0.0
    %1167 = vmatprep.subr.mxu0 0.0
    %1168 = vmatpush1.xpose.msra.mxu0 0.0
    %1169 = vmatprep.subr.mxu0 0.0
    %1170 = vmatpush1.xpose.msra.mxu0 0.0
    %1171 = vmatprep.subr.mxu0 0.0
    %1172 = vmatpush1.xpose.msra.mxu0 0.0
    %1173 = vmatprep.subr.mxu0 0.0
    %1174 = vmatpush1.xpose.msra.mxu0 0.0
    %1175 = vmatprep.subr.mxu0 0.0
    %1176 = vmatpush1.xpose.msra.mxu0 0.0
    %1177 = vmatprep.subr.mxu0 0.0
    %1178 = vmatpush1.xpose.msra.mxu0 0.0
    %1179 = vmatprep.subr.mxu0 0.0
    %1180 = vmatpush1.xpose.msra.mxu0 0.0
    %1181 = vmatprep.subr.mxu0 0.0
    %1182 = vmatpush1.xpose.msra.mxu0 0.0
    %1183 = vmatprep.subr.mxu0 0.0
    %1184 = vmatpush1.xpose.msra.mxu0 0.0
    %1185 = vmatprep.subr.mxu0 0.0
    %1186 = vmatpush1.xpose.msra.mxu0 0.0
    %1187 = vmatprep.subr.mxu0 0.0
    %1188 = vmatpush1.xpose.msra.mxu0 0.0
    %1189 = vmatprep.subr.mxu0 0.0
    %1190 = vmatpush1.xpose.msra.mxu0 0.0
    %1191 = vmatprep.subr.mxu0 0.0
    %1192 = vmatpush1.xpose.msra.mxu0 0.0
    %1193 = vmatprep.subr.mxu0 0.0
    %1194 = vmatpush1.xpose.msra.mxu0 0.0
    %1195 = vmatprep.subr.mxu0 0.0
    %1196 = vmatpush1.xpose.msra.mxu0 0.0
    %1197 = vmatprep.subr.mxu0 0.0
    %1198 = vmatpush1.xpose.msra.mxu0 0.0
    %1199 = vmatprep.subr.mxu0 0.0
    %1200 = vmatpush1.xpose.msra.mxu0 0.0
    %1201 = vmatprep.subr.mxu0 0.0
    %1202 = vmatpush1.xpose.msra.mxu0 0.0
    %1203 = vmatprep.subr.mxu0 0.0
    %1204 = vmatpush1.xpose.msra.mxu0 0.0
    %1205 = vmatprep.subr.mxu0 0.0
    %1206 = vmatpush1.xpose.msra.mxu0 0.0
    %1207 = vmatprep.subr.mxu0 0.0
    %1208 = vmatpush1.xpose.msra.mxu0 0.0
    %1209 = vmatprep.subr.mxu0 0.0
    %1210 = vmatpush1.xpose.msra.mxu0 0.0
    %1211 = vmatprep.subr.mxu0 0.0
    %1212 = vmatpush1.xpose.msra.mxu0 0.0
    %1213 = vmatprep.subr.mxu0 0.0
    %1214 = vmatpush1.xpose.msra.mxu0 0.0
    %1215 = vmatprep.subr.mxu0 0.0
    %1216 = vmatpush1.xpose.msra.mxu0 0.0
    %1217 = vmatprep.subr.mxu0 0.0
    %1218 = vmatpush1.xpose.msra.mxu0 0.0
    %1219 = vmatprep.subr.mxu0 0.0
    %1220 = vmatpush1.xpose.msra.mxu0 0.0
    %1221 = vmatprep.subr.mxu0 0.0
    %1222 = vmatpush1.xpose.msra.mxu0 0.0
    %1223 = vmatprep.mubr.f32.mxu0 0.0
    %1224 = vmatmul.mubr.f32.gmra.mrb[0].mxu0 %v1155
    %v1225 = vpop.f32.mrb[0].mxu0
    %v1226 = vadd.f32 %v38, %v1225
    %v1227 = vpop.f32.mrb[0].mxu0
    %1228 = vmatprep.mubr.f32.mxu0 0.0
    %1229 = vmatmul.mubr.f32.gmra.mrb[0].mxu0 %v1157
    %v1230 = vpop.f32.mrb[0].mxu0
    %v1231 = vadd.f32 %v39, %v1230
    %v1232 = vpop.f32.mrb[0].mxu0
    %1233 = vdwg.mxu0
    %v1234 = vsel %vm321, %v1226, -inf
    %1235 = vmax.xlane.f32.xlu0 %v1234
    %v1236 = vpop.xlane.xlu0 %1235
    %v1237 = vsel %vm321, %v1231, -inf
    %1238 = vmax.xlane.f32.xlu0 %v1237
    %v1239 = vpop.xlane.xlu0 %1238
    %v1240 = vsub.f32 %v1226, %v1236
    %v1241 = vsub.f32 %v1231, %v1239
    %v1242 = vmul.f32 %v1240, 1.442695
    %v1243 = vpow.pop %v1242
    %v1244 = vmul.f32 %v1241, 1.442695
    %v1245 = vpow.pop %v1244
    %v1246 = vsel %vm321, %v1243, 0.0
    %1247 = vadd.xlane.f32.xlu0 %v1246
    %v1248 = vpop.xlane.xlu0 %1247
    %v1249 = vsel %vm321, %v1245, 0.0
    %1250 = vadd.xlane.f32.xlu0 %v1249
    %v1251 = vpop.xlane.xlu0 %1250
    %v1252 = vrcp.pop %v1248
    %v1253 = vrcp.pop %v1251
    %v1254 = vmul.f32 %v1243, %v1252
    %v1255 = vmul.f32 %v1245, %v1253
    %1258 = vrot.lane.b32.xlu0 %v232, 96
    %v1259 = vpop.permute.xlu0 %1258
    %1260 = vrot.lane.b32.xlu0 %v237, 96
    %v1261 = vpop.permute.xlu0 %1260
    %v1265 = vsel %vm321, %v1254, 0
    %v1268 = vsel %vm321, %v1255, 0
    %1270 = vmatprep.subr.mxu0 0.0
    %1271 = vmatpush1.msra.mxu0 %v1259
    %1272 = vmatprep.subr.mxu0 0.0
    %1273 = vmatpush1.msra.mxu0 %v1261
    %1274 = vmatprep.subr.mxu0 0.0
    %1275 = vmatpush1.msra.mxu0 0.0
    %1276 = vmatprep.subr.mxu0 0.0
    %1277 = vmatpush1.msra.mxu0 0.0
    %1278 = vmatprep.subr.mxu0 0.0
    %1279 = vmatpush1.msra.mxu0 0.0
    %1280 = vmatprep.subr.mxu0 0.0
    %1281 = vmatpush1.msra.mxu0 0.0
    %1282 = vmatprep.subr.mxu0 0.0
    %1283 = vmatpush1.msra.mxu0 0.0
    %1284 = vmatprep.subr.mxu0 0.0
    %1285 = vmatpush1.msra.mxu0 0.0
    %1286 = vmatprep.subr.mxu0 0.0
    %1287 = vmatpush1.msra.mxu0 0.0
    %1288 = vmatprep.subr.mxu0 0.0
    %1289 = vmatpush1.msra.mxu0 0.0
    %1290 = vmatprep.subr.mxu0 0.0
    %1291 = vmatpush1.msra.mxu0 0.0
    %1292 = vmatprep.subr.mxu0 0.0
    %1293 = vmatpush1.msra.mxu0 0.0
    %1294 = vmatprep.subr.mxu0 0.0
    %1295 = vmatpush1.msra.mxu0 0.0
    %1296 = vmatprep.subr.mxu0 0.0
    %1297 = vmatpush1.msra.mxu0 0.0
    %1298 = vmatprep.subr.mxu0 0.0
    %1299 = vmatpush1.msra.mxu0 0.0
    %1300 = vmatprep.subr.mxu0 0.0
    %1301 = vmatpush1.msra.mxu0 0.0
    %1302 = vmatprep.subr.mxu0 0.0
    %1303 = vmatpush1.msra.mxu0 0.0
    %1304 = vmatprep.subr.mxu0 0.0
    %1305 = vmatpush1.msra.mxu0 0.0
    %1306 = vmatprep.subr.mxu0 0.0
    %1307 = vmatpush1.msra.mxu0 0.0
    %1308 = vmatprep.subr.mxu0 0.0
    %1309 = vmatpush1.msra.mxu0 0.0
    %1310 = vmatprep.subr.mxu0 0.0
    %1311 = vmatpush1.msra.mxu0 0.0
    %1312 = vmatprep.subr.mxu0 0.0
    %1313 = vmatpush1.msra.mxu0 0.0
    %1314 = vmatprep.subr.mxu0 0.0
    %1315 = vmatpush1.msra.mxu0 0.0
    %1316 = vmatprep.subr.mxu0 0.0
    %1317 = vmatpush1.msra.mxu0 0.0
    %1318 = vmatprep.subr.mxu0 0.0
    %1319 = vmatpush1.msra.mxu0 0.0
    %1320 = vmatprep.subr.mxu0 0.0
    %1321 = vmatpush1.msra.mxu0 0.0
    %1322 = vmatprep.subr.mxu0 0.0
    %1323 = vmatpush1.msra.mxu0 0.0
    %1324 = vmatprep.subr.mxu0 0.0
    %1325 = vmatpush1.msra.mxu0 0.0
    %1326 = vmatprep.subr.mxu0 0.0
    %1327 = vmatpush1.msra.mxu0 0.0
    %1328 = vmatprep.subr.mxu0 0.0
    %1329 = vmatpush1.msra.mxu0 0.0
    %1330 = vmatprep.subr.mxu0 0.0
    %1331 = vmatpush1.msra.mxu0 0.0
    %1332 = vmatprep.subr.mxu0 0.0
    %1333 = vmatpush1.msra.mxu0 0.0
    %1334 = vmatprep.mubr.f32.mxu0 0.0
    %1335 = vmatmul.mubr.f32.gmra.mrb[0].mxu0 %v1265
    %v1336 = vpop.f32.mrb[0].mxu0
    %v1337 = vadd.f32 0.0, %v1336
    %v1338 = vpop.f32.mrb[0].mxu0
    %1339 = vmatprep.mubr.f32.mxu0 0.0
    %1340 = vmatmul.mubr.f32.gmra.mrb[0].mxu0 %v1268
    %v1341 = vpop.f32.mrb[0].mxu0
    %v1342 = vadd.f32 0.0, %v1341
    %v1343 = vpop.f32.mrb[0].mxu0
    %1344 = vdwg.mxu0
    %v1346 = vsel %vm321, %v1149, 0
    %v1349 = vsel %vm321, %v1150, 0
    %1351 = vmatprep.subr.mxu0 0.0
    %1352 = vmatpush1.msra.mxu0 %v232
    %1353 = vmatprep.subr.mxu0 0.0
    %1354 = vmatpush1.msra.mxu0 %v237
    %1355 = vmatprep.subr.mxu0 0.0
    %1356 = vmatpush1.msra.mxu0 0.0
    %1357 = vmatprep.subr.mxu0 0.0
    %1358 = vmatpush1.msra.mxu0 0.0
    %1359 = vmatprep.subr.mxu0 0.0
    %1360 = vmatpush1.msra.mxu0 0.0
    %1361 = vmatprep.subr.mxu0 0.0
    %1362 = vmatpush1.msra.mxu0 0.0
    %1363 = vmatprep.subr.mxu0 0.0
    %1364 = vmatpush1.msra.mxu0 0.0
    %1365 = vmatprep.subr.mxu0 0.0
    %1366 = vmatpush1.msra.mxu0 0.0
    %1367 = vmatprep.subr.mxu0 0.0
    %1368 = vmatpush1.msra.mxu0 0.0
    %1369 = vmatprep.subr.mxu0 0.0
    %1370 = vmatpush1.msra.mxu0 0.0
    %1371 = vmatprep.subr.mxu0 0.0
    %1372 = vmatpush1.msra.mxu0 0.0
    %1373 = vmatprep.subr.mxu0 0.0
    %1374 = vmatpush1.msra.mxu0 0.0
    %1375 = vmatprep.subr.mxu0 0.0
    %1376 = vmatpush1.msra.mxu0 0.0
    %1377 = vmatprep.subr.mxu0 0.0
    %1378 = vmatpush1.msra.mxu0 0.0
    %1379 = vmatprep.subr.mxu0 0.0
    %1380 = vmatpush1.msra.mxu0 0.0
    %1381 = vmatprep.subr.mxu0 0.0
    %1382 = vmatpush1.msra.mxu0 0.0
    %1383 = vmatprep.subr.mxu0 0.0
    %1384 = vmatpush1.msra.mxu0 0.0
    %1385 = vmatprep.subr.mxu0 0.0
    %1386 = vmatpush1.msra.mxu0 0.0
    %1387 = vmatprep.subr.mxu0 0.0
    %1388 = vmatpush1.msra.mxu0 0.0
    %1389 = vmatprep.subr.mxu0 0.0
    %1390 = vmatpush1.msra.mxu0 0.0
    %1391 = vmatprep.subr.mxu0 0.0
    %1392 = vmatpush1.msra.mxu0 0.0
    %1393 = vmatprep.subr.mxu0 0.0
    %1394 = vmatpush1.msra.mxu0 0.0
    %1395 = vmatprep.subr.mxu0 0.0
    %1396 = vmatpush1.msra.mxu0 0.0
    %1397 = vmatprep.subr.mxu0 0.0
    %1398 = vmatpush1.msra.mxu0 0.0
    %1399 = vmatprep.subr.mxu0 0.0
    %1400 = vmatpush1.msra.mxu0 0.0
    %1401 = vmatprep.subr.mxu0 0.0
    %1402 = vmatpush1.msra.mxu0 0.0
    %1403 = vmatprep.subr.mxu0 0.0
    %1404 = vmatpush1.msra.mxu0 0.0
    %1405 = vmatprep.subr.mxu0 0.0
    %1406 = vmatpush1.msra.mxu0 0.0
    %1407 = vmatprep.subr.mxu0 0.0
    %1408 = vmatpush1.msra.mxu0 0.0
    %1409 = vmatprep.subr.mxu0 0.0
    %1410 = vmatpush1.msra.mxu0 0.0
    %1411 = vmatprep.subr.mxu0 0.0
    %1412 = vmatpush1.msra.mxu0 0.0
    %1413 = vmatprep.subr.mxu0 0.0
    %1414 = vmatpush1.msra.mxu0 0.0
    %1415 = vmatprep.mubr.f32.mxu0 0.0
    %1416 = vmatmul.mubr.f32.gmra.mrb[0].mxu0 %v1346
    %v1417 = vpop.f32.mrb[0].mxu0
    %v1418 = vadd.f32 %v1337, %v1417
    %v1419 = vpop.f32.mrb[0].mxu0
    %1420 = vmatprep.mubr.f32.mxu0 0.0
    %1421 = vmatmul.mubr.f32.gmra.mrb[0].mxu0 %v1349
    %v1422 = vpop.f32.mrb[0].mxu0
    %v1423 = vadd.f32 %v1342, %v1422
    %v1424 = vpop.f32.mrb[0].mxu0
    %1425 = vdwg.mxu0
    %1426 = vrot.lane.b32.xlu0 %v221, 64
    %v1427 = vpop.permute.xlu0 %1426
    %1428 = vrot.lane.b32.xlu0 %v226, 64
    %v1429 = vpop.permute.xlu0 %1428
    %v1430 = vsel %vm56, %v1427, 0
    %v1432 = vsel %vm56, %v1429, 0
    %1434 = vmatprep.subr.mxu0 0.0
    %1435 = vmatpush1.xpose.msra.mxu0 %v64
    %1436 = vmatprep.subr.mxu0 0.0
    %1437 = vmatpush1.xpose.msra.mxu0 %v67
    %1438 = vmatprep.subr.mxu0 0.0
    %1439 = vmatpush1.xpose.msra.mxu0 0.0
    %1440 = vmatprep.subr.mxu0 0.0
    %1441 = vmatpush1.xpose.msra.mxu0 0.0
    %1442 = vmatprep.subr.mxu0 0.0
    %1443 = vmatpush1.xpose.msra.mxu0 0.0
    %1444 = vmatprep.subr.mxu0 0.0
    %1445 = vmatpush1.xpose.msra.mxu0 0.0
    %1446 = vmatprep.subr.mxu0 0.0
    %1447 = vmatpush1.xpose.msra.mxu0 0.0
    %1448 = vmatprep.subr.mxu0 0.0
    %1449 = vmatpush1.xpose.msra.mxu0 0.0
    %1450 = vmatprep.subr.mxu0 0.0
    %1451 = vmatpush1.xpose.msra.mxu0 0.0
    %1452 = vmatprep.subr.mxu0 0.0
    %1453 = vmatpush1.xpose.msra.mxu0 0.0
    %1454 = vmatprep.subr.mxu0 0.0
    %1455 = vmatpush1.xpose.msra.mxu0 0.0
    %1456 = vmatprep.subr.mxu0 0.0
    %1457 = vmatpush1.xpose.msra.mxu0 0.0
    %1458 = vmatprep.subr.mxu0 0.0
    %1459 = vmatpush1.xpose.msra.mxu0 0.0
    %1460 = vmatprep.subr.mxu0 0.0
    %1461 = vmatpush1.xpose.msra.mxu0 0.0
    %1462 = vmatprep.subr.mxu0 0.0
    %1463 = vmatpush1.xpose.msra.mxu0 0.0
    %1464 = vmatprep.subr.mxu0 0.0
    %1465 = vmatpush1.xpose.msra.mxu0 0.0
    %1466 = vmatprep.subr.mxu0 0.0
    %1467 = vmatpush1.xpose.msra.mxu0 0.0
    %1468 = vmatprep.subr.mxu0 0.0
    %1469 = vmatpush1.xpose.msra.mxu0 0.0
    %1470 = vmatprep.subr.mxu0 0.0
    %1471 = vmatpush1.xpose.msra.mxu0 0.0
    %1472 = vmatprep.subr.mxu0 0.0
    %1473 = vmatpush1.xpose.msra.mxu0 0.0
    %1474 = vmatprep.subr.mxu0 0.0
    %1475 = vmatpush1.xpose.msra.mxu0 0.0
    %1476 = vmatprep.subr.mxu0 0.0
    %1477 = vmatpush1.xpose.msra.mxu0 0.0
    %1478 = vmatprep.subr.mxu0 0.0
    %1479 = vmatpush1.xpose.msra.mxu0 0.0
    %1480 = vmatprep.subr.mxu0 0.0
    %1481 = vmatpush1.xpose.msra.mxu0 0.0
    %1482 = vmatprep.subr.mxu0 0.0
    %1483 = vmatpush1.xpose.msra.mxu0 0.0
    %1484 = vmatprep.subr.mxu0 0.0
    %1485 = vmatpush1.xpose.msra.mxu0 0.0
    %1486 = vmatprep.subr.mxu0 0.0
    %1487 = vmatpush1.xpose.msra.mxu0 0.0
    %1488 = vmatprep.subr.mxu0 0.0
    %1489 = vmatpush1.xpose.msra.mxu0 0.0
    %1490 = vmatprep.subr.mxu0 0.0
    %1491 = vmatpush1.xpose.msra.mxu0 0.0
    %1492 = vmatprep.subr.mxu0 0.0
    %1493 = vmatpush1.xpose.msra.mxu0 0.0
    %1494 = vmatprep.subr.mxu0 0.0
    %1495 = vmatpush1.xpose.msra.mxu0 0.0
    %1496 = vmatprep.subr.mxu0 0.0
    %1497 = vmatpush1.xpose.msra.mxu0 0.0
    %1498 = vmatprep.mubr.f32.mxu0 0.0
    %1499 = vmatmul.mubr.f32.gmra.mrb[0].mxu0 %v1430
    %v1500 = vpop.f32.mrb[0].mxu0
    %v1501 = vadd.f32 %v38, %v1500
    %v1502 = vpop.f32.mrb[0].mxu0
    %1503 = vmatprep.mubr.f32.mxu0 0.0
    %1504 = vmatmul.mubr.f32.gmra.mrb[0].mxu0 %v1432
    %v1505 = vpop.f32.mrb[0].mxu0
    %v1506 = vadd.f32 %v39, %v1505
    %v1507 = vpop.f32.mrb[0].mxu0
    %1508 = vdwg.mxu0
    %v1509 = vsel %vm321, %v1501, -inf
    %1510 = vmax.xlane.f32.xlu0 %v1509
    %v1511 = vpop.xlane.xlu0 %1510
    %v1512 = vsel %vm321, %v1506, -inf
    %1513 = vmax.xlane.f32.xlu0 %v1512
    %v1514 = vpop.xlane.xlu0 %1513
    %v1515 = vsub.f32 %v1501, %v1511
    %v1516 = vsub.f32 %v1506, %v1514
    %v1517 = vmul.f32 %v1515, 1.442695
    %v1518 = vpow.pop %v1517
    %v1519 = vmul.f32 %v1516, 1.442695
    %v1520 = vpow.pop %v1519
    %v1521 = vsel %vm321, %v1518, 0.0
    %1522 = vadd.xlane.f32.xlu0 %v1521
    %v1523 = vpop.xlane.xlu0 %1522
    %v1524 = vsel %vm321, %v1520, 0.0
    %1525 = vadd.xlane.f32.xlu0 %v1524
    %v1526 = vpop.xlane.xlu0 %1525
    %v1527 = vrcp.pop %v1523
    %v1528 = vrcp.pop %v1526
    %v1529 = vmul.f32 %v1518, %v1527
    %v1530 = vmul.f32 %v1520, %v1528
    %1531 = vrot.lane.b32.xlu0 %v232, 64
    %v1532 = vpop.permute.xlu0 %1531
    %1533 = vrot.lane.b32.xlu0 %v237, 64
    %v1534 = vpop.permute.xlu0 %1533
    %v1538 = vsel %vm321, %v1529, 0
    %v1541 = vsel %vm321, %v1530, 0
    %1543 = vmatprep.subr.mxu0 0.0
    %1544 = vmatpush1.msra.mxu0 %v1532
    %1545 = vmatprep.subr.mxu0 0.0
    %1546 = vmatpush1.msra.mxu0 %v1534
    %1547 = vmatprep.subr.mxu0 0.0
    %1548 = vmatpush1.msra.mxu0 0.0
    %1549 = vmatprep.subr.mxu0 0.0
    %1550 = vmatpush1.msra.mxu0 0.0
    %1551 = vmatprep.subr.mxu0 0.0
    %1552 = vmatpush1.msra.mxu0 0.0
    %1553 = vmatprep.subr.mxu0 0.0
    %1554 = vmatpush1.msra.mxu0 0.0
    %1555 = vmatprep.subr.mxu0 0.0
    %1556 = vmatpush1.msra.mxu0 0.0
    %1557 = vmatprep.subr.mxu0 0.0
    %1558 = vmatpush1.msra.mxu0 0.0
    %1559 = vmatprep.subr.mxu0 0.0
    %1560 = vmatpush1.msra.mxu0 0.0
    %1561 = vmatprep.subr.mxu0 0.0
    %1562 = vmatpush1.msra.mxu0 0.0
    %1563 = vmatprep.subr.mxu0 0.0
    %1564 = vmatpush1.msra.mxu0 0.0
    %1565 = vmatprep.subr.mxu0 0.0
    %1566 = vmatpush1.msra.mxu0 0.0
    %1567 = vmatprep.subr.mxu0 0.0
    %1568 = vmatpush1.msra.mxu0 0.0
    %1569 = vmatprep.subr.mxu0 0.0
    %1570 = vmatpush1.msra.mxu0 0.0
    %1571 = vmatprep.subr.mxu0 0.0
    %1572 = vmatpush1.msra.mxu0 0.0
    %1573 = vmatprep.subr.mxu0 0.0
    %1574 = vmatpush1.msra.mxu0 0.0
    %1575 = vmatprep.subr.mxu0 0.0
    %1576 = vmatpush1.msra.mxu0 0.0
    %1577 = vmatprep.subr.mxu0 0.0
    %1578 = vmatpush1.msra.mxu0 0.0
    %1579 = vmatprep.subr.mxu0 0.0
    %1580 = vmatpush1.msra.mxu0 0.0
    %1581 = vmatprep.subr.mxu0 0.0
    %1582 = vmatpush1.msra.mxu0 0.0
    %1583 = vmatprep.subr.mxu0 0.0
    %1584 = vmatpush1.msra.mxu0 0.0
    %1585 = vmatprep.subr.mxu0 0.0
    %1586 = vmatpush1.msra.mxu0 0.0
    %1587 = vmatprep.subr.mxu0 0.0
    %1588 = vmatpush1.msra.mxu0 0.0
    %1589 = vmatprep.subr.mxu0 0.0
    %1590 = vmatpush1.msra.mxu0 0.0
    %1591 = vmatprep.subr.mxu0 0.0
    %1592 = vmatpush1.msra.mxu0 0.0
    %1593 = vmatprep.subr.mxu0 0.0
    %1594 = vmatpush1.msra.mxu0 0.0
    %1595 = vmatprep.subr.mxu0 0.0
    %1596 = vmatpush1.msra.mxu0 0.0
    %1597 = vmatprep.subr.mxu0 0.0
    %1598 = vmatpush1.msra.mxu0 0.0
    %1599 = vmatprep.subr.mxu0 0.0
    %1600 = vmatpush1.msra.mxu0 0.0
    %1601 = vmatprep.subr.mxu0 0.0
    %1602 = vmatpush1.msra.mxu0 0.0
    %1603 = vmatprep.subr.mxu0 0.0
    %1604 = vmatpush1.msra.mxu0 0.0
    %1605 = vmatprep.subr.mxu0 0.0
    %1606 = vmatpush1.msra.mxu0 0.0
    %1607 = vmatprep.mubr.f32.mxu0 0.0
    %1608 = vmatmul.mubr.f32.gmra.mrb[0].mxu0 %v1538
    %v1609 = vpop.f32.mrb[0].mxu0
    %v1610 = vadd.f32 0.0, %v1609
    %v1611 = vpop.f32.mrb[0].mxu0
    %1612 = vmatprep.mubr.f32.mxu0 0.0
    %1613 = vmatmul.mubr.f32.gmra.mrb[0].mxu0 %v1541
    %v1614 = vpop.f32.mrb[0].mxu0
    %v1615 = vadd.f32 0.0, %v1614
    %v1616 = vpop.f32.mrb[0].mxu0
    %1617 = vdwg.mxu0
    %v1618 = vadd.f32 %v1418, %v1610
    %v1619 = vadd.f32 %v1423, %v1615
    %1620 = vrot.lane.b32.xlu0 %v221, 32
    %v1621 = vpop.permute.xlu0 %1620
    %1622 = vrot.lane.b32.xlu0 %v226, 32
    %v1623 = vpop.permute.xlu0 %1622
    %v1624 = vsel %vm56, %v1621, 0
    %v1626 = vsel %vm56, %v1623, 0
    %1628 = vmatprep.subr.mxu0 0.0
    %1629 = vmatpush1.xpose.msra.mxu0 %v64
    %1630 = vmatprep.subr.mxu0 0.0
    %1631 = vmatpush1.xpose.msra.mxu0 %v67
    %1632 = vmatprep.subr.mxu0 0.0
    %1633 = vmatpush1.xpose.msra.mxu0 0.0
    %1634 = vmatprep.subr.mxu0 0.0
    %1635 = vmatpush1.xpose.msra.mxu0 0.0
    %1636 = vmatprep.subr.mxu0 0.0
    %1637 = vmatpush1.xpose.msra.mxu0 0.0
    %1638 = vmatprep.subr.mxu0 0.0
    %1639 = vmatpush1.xpose.msra.mxu0 0.0
    %1640 = vmatprep.subr.mxu0 0.0
    %1641 = vmatpush1.xpose.msra.mxu0 0.0
    %1642 = vmatprep.subr.mxu0 0.0
    %1643 = vmatpush1.xpose.msra.mxu0 0.0
    %1644 = vmatprep.subr.mxu0 0.0
    %1645 = vmatpush1.xpose.msra.mxu0 0.0
    %1646 = vmatprep.subr.mxu0 0.0
    %1647 = vmatpush1.xpose.msra.mxu0 0.0
    %1648 = vmatprep.subr.mxu0 0.0
    %1649 = vmatpush1.xpose.msra.mxu0 0.0
    %1650 = vmatprep.subr.mxu0 0.0
    %1651 = vmatpush1.xpose.msra.mxu0 0.0
    %1652 = vmatprep.subr.mxu0 0.0
    %1653 = vmatpush1.xpose.msra.mxu0 0.0
    %1654 = vmatprep.subr.mxu0 0.0
    %1655 = vmatpush1.xpose.msra.mxu0 0.0
    %1656 = vmatprep.subr.mxu0 0.0
    %1657 = vmatpush1.xpose.msra.mxu0 0.0
    %1658 = vmatprep.subr.mxu0 0.0
    %1659 = vmatpush1.xpose.msra.mxu0 0.0
    %1660 = vmatprep.subr.mxu0 0.0
    %1661 = vmatpush1.xpose.msra.mxu0 0.0
    %1662 = vmatprep.subr.mxu0 0.0
    %1663 = vmatpush1.xpose.msra.mxu0 0.0
    %1664 = vmatprep.subr.mxu0 0.0
    %1665 = vmatpush1.xpose.msra.mxu0 0.0
    %1666 = vmatprep.subr.mxu0 0.0
    %1667 = vmatpush1.xpose.msra.mxu0 0.0
    %1668 = vmatprep.subr.mxu0 0.0
    %1669 = vmatpush1.xpose.msra.mxu0 0.0
    %1670 = vmatprep.subr.mxu0 0.0
    %1671 = vmatpush1.xpose.msra.mxu0 0.0
    %1672 = vmatprep.subr.mxu0 0.0
    %1673 = vmatpush1.xpose.msra.mxu0 0.0
    %1674 = vmatprep.subr.mxu0 0.0
    %1675 = vmatpush1.xpose.msra.mxu0 0.0
    %1676 = vmatprep.subr.mxu0 0.0
    %1677 = vmatpush1.xpose.msra.mxu0 0.0
    %1678 = vmatprep.subr.mxu0 0.0
    %1679 = vmatpush1.xpose.msra.mxu0 0.0
    %1680 = vmatprep.subr.mxu0 0.0
    %1681 = vmatpush1.xpose.msra.mxu0 0.0
    %1682 = vmatprep.subr.mxu0 0.0
    %1683 = vmatpush1.xpose.msra.mxu0 0.0
    %1684 = vmatprep.subr.mxu0 0.0
    %1685 = vmatpush1.xpose.msra.mxu0 0.0
    %1686 = vmatprep.subr.mxu0 0.0
    %1687 = vmatpush1.xpose.msra.mxu0 0.0
    %1688 = vmatprep.subr.mxu0 0.0
    %1689 = vmatpush1.xpose.msra.mxu0 0.0
    %1690 = vmatprep.subr.mxu0 0.0
    %1691 = vmatpush1.xpose.msra.mxu0 0.0
    %1692 = vmatprep.mubr.f32.mxu0 0.0
    %1693 = vmatmul.mubr.f32.gmra.mrb[0].mxu0 %v1624
    %v1694 = vpop.f32.mrb[0].mxu0
    %v1695 = vadd.f32 %v38, %v1694
    %v1696 = vpop.f32.mrb[0].mxu0
    %1697 = vmatprep.mubr.f32.mxu0 0.0
    %1698 = vmatmul.mubr.f32.gmra.mrb[0].mxu0 %v1626
    %v1699 = vpop.f32.mrb[0].mxu0
    %v1700 = vadd.f32 %v39, %v1699
    %v1701 = vpop.f32.mrb[0].mxu0
    %1702 = vdwg.mxu0
    %v1703 = vsel %vm321, %v1695, -inf
    %1704 = vmax.xlane.f32.xlu0 %v1703
    %v1705 = vpop.xlane.xlu0 %1704
    %v1706 = vsel %vm321, %v1700, -inf
    %1707 = vmax.xlane.f32.xlu0 %v1706
    %v1708 = vpop.xlane.xlu0 %1707
    %v1709 = vsub.f32 %v1695, %v1705
    %v1710 = vsub.f32 %v1700, %v1708
    %v1711 = vmul.f32 %v1709, 1.442695
    %v1712 = vpow.pop %v1711
    %v1713 = vmul.f32 %v1710, 1.442695
    %v1714 = vpow.pop %v1713
    %v1715 = vsel %vm321, %v1712, 0.0
    %1716 = vadd.xlane.f32.xlu0 %v1715
    %v1717 = vpop.xlane.xlu0 %1716
    %v1718 = vsel %vm321, %v1714, 0.0
    %1719 = vadd.xlane.f32.xlu0 %v1718
    %v1720 = vpop.xlane.xlu0 %1719
    %v1721 = vrcp.pop %v1717
    %v1722 = vrcp.pop %v1720
    %v1723 = vmul.f32 %v1712, %v1721
    %v1724 = vmul.f32 %v1714, %v1722
    %1725 = vrot.lane.b32.xlu0 %v232, 32
    %v1726 = vpop.permute.xlu0 %1725
    %1727 = vrot.lane.b32.xlu0 %v237, 32
    %v1728 = vpop.permute.xlu0 %1727
    %v1732 = vsel %vm321, %v1723, 0
    %v1735 = vsel %vm321, %v1724, 0
    %1737 = vmatprep.subr.mxu0 0.0
    %1738 = vmatpush1.msra.mxu0 %v1726
    %1739 = vmatprep.subr.mxu0 0.0
    %1740 = vmatpush1.msra.mxu0 %v1728
    %1741 = vmatprep.subr.mxu0 0.0
    %1742 = vmatpush1.msra.mxu0 0.0
    %1743 = vmatprep.subr.mxu0 0.0
    %1744 = vmatpush1.msra.mxu0 0.0
    %1745 = vmatprep.subr.mxu0 0.0
    %1746 = vmatpush1.msra.mxu0 0.0
    %1747 = vmatprep.subr.mxu0 0.0
    %1748 = vmatpush1.msra.mxu0 0.0
    %1749 = vmatprep.subr.mxu0 0.0
    %1750 = vmatpush1.msra.mxu0 0.0
    %1751 = vmatprep.subr.mxu0 0.0
    %1752 = vmatpush1.msra.mxu0 0.0
    %1753 = vmatprep.subr.mxu0 0.0
    %1754 = vmatpush1.msra.mxu0 0.0
    %1755 = vmatprep.subr.mxu0 0.0
    %1756 = vmatpush1.msra.mxu0 0.0
    %1757 = vmatprep.subr.mxu0 0.0
    %1758 = vmatpush1.msra.mxu0 0.0
    %1759 = vmatprep.subr.mxu0 0.0
    %1760 = vmatpush1.msra.mxu0 0.0
    %1761 = vmatprep.subr.mxu0 0.0
    %1762 = vmatpush1.msra.mxu0 0.0
    %1763 = vmatprep.subr.mxu0 0.0
    %1764 = vmatpush1.msra.mxu0 0.0
    %1765 = vmatprep.subr.mxu0 0.0
    %1766 = vmatpush1.msra.mxu0 0.0
    %1767 = vmatprep.subr.mxu0 0.0
    %1768 = vmatpush1.msra.mxu0 0.0
    %1769 = vmatprep.subr.mxu0 0.0
    %1770 = vmatpush1.msra.mxu0 0.0
    %1771 = vmatprep.subr.mxu0 0.0
    %1772 = vmatpush1.msra.mxu0 0.0
    %1773 = vmatprep.subr.mxu0 0.0
    %1774 = vmatpush1.msra.mxu0 0.0
    %1775 = vmatprep.subr.mxu0 0.0
    %1776 = vmatpush1.msra.mxu0 0.0
    %1777 = vmatprep.subr.mxu0 0.0
    %1778 = vmatpush1.msra.mxu0 0.0
    %1779 = vmatprep.subr.mxu0 0.0
    %1780 = vmatpush1.msra.mxu0 0.0
    %1781 = vmatprep.subr.mxu0 0.0
    %1782 = vmatpush1.msra.mxu0 0.0
    %1783 = vmatprep.subr.mxu0 0.0
    %1784 = vmatpush1.msra.mxu0 0.0
    %1785 = vmatprep.subr.mxu0 0.0
    %1786 = vmatpush1.msra.mxu0 0.0
    %1787 = vmatprep.subr.mxu0 0.0
    %1788 = vmatpush1.msra.mxu0 0.0
    %1789 = vmatprep.subr.mxu0 0.0
    %1790 = vmatpush1.msra.mxu0 0.0
    %1791 = vmatprep.subr.mxu0 0.0
    %1792 = vmatpush1.msra.mxu0 0.0
    %1793 = vmatprep.subr.mxu0 0.0
    %1794 = vmatpush1.msra.mxu0 0.0
    %1795 = vmatprep.subr.mxu0 0.0
    %1796 = vmatpush1.msra.mxu0 0.0
    %1797 = vmatprep.subr.mxu0 0.0
    %1798 = vmatpush1.msra.mxu0 0.0
    %1799 = vmatprep.subr.mxu0 0.0
    %1800 = vmatpush1.msra.mxu0 0.0
    %1801 = vmatprep.mubr.f32.mxu0 0.0
    %1802 = vmatmul.mubr.f32.gmra.mrb[0].mxu0 %v1732
    %v1803 = vpop.f32.mrb[0].mxu0
    %v1804 = vadd.f32 0.0, %v1803
    %v1805 = vpop.f32.mrb[0].mxu0
    %1806 = vmatprep.mubr.f32.mxu0 0.0
    %1807 = vmatmul.mubr.f32.gmra.mrb[0].mxu0 %v1735
    %v1808 = vpop.f32.mrb[0].mxu0
    %v1809 = vadd.f32 0.0, %v1808
    %v1810 = vpop.f32.mrb[0].mxu0
    %1811 = vdwg.mxu0
    %v1812 = vadd.f32 %v1618, %v1804
    %v1813 = vadd.f32 %v1619, %v1809
    %v1814 = vadd.f32 %v1812, %v1046
    %v1815 = vadd.f32 %v1813, %v1047
    %v1816 = vsel %vm56, %v1814, 0.0
    %1817 = vadd.xlane.f32.xlu0 %v1816
    %v1818 = vpop.xlane.xlu0 %1817
    %v1819 = vsel %vm56, %v1815, 0.0
    %1820 = vadd.xlane.f32.xlu0 %v1819
    %v1821 = vpop.xlane.xlu0 %1820
    %v1822 = vmul.f32 %v1818, %v1015
    %v1823 = vmul.f32 %v1821, %v1015
    %v1824 = vsub.f32 %v1814, %v1822
    %v1825 = vsub.f32 %v1815, %v1823
    %v1826 = vmul.f32 %v1824, %v1824
    %v1827 = vmul.f32 %v1825, %v1825
    %v1828 = vsel %vm56, %v1826, 0.0
    %1829 = vadd.xlane.f32.xlu0 %v1828
    %v1830 = vpop.xlane.xlu0 %1829
    %v1831 = vsel %vm56, %v1827, 0.0
    %1832 = vadd.xlane.f32.xlu0 %v1831
    %v1833 = vpop.xlane.xlu0 %1832
    %v1834 = vmul.f32 %v1830, 0.032258064
    %v1835 = vmul.f32 %v1833, 0.032258064
    %v1836 = vadd.f32 %v1834, 1e-12
    %v1837 = vadd.f32 %v1835, 1e-12
    %v1838 = vrsqrt.pop %v1836
    %v1839 = vrsqrt.pop %v1837
    %v1840 = vlaneseq
    %v1841 = vshrl.u32 %v1840, 7
    %v1842 = vsub.s32 4, %v1841
    %v1843 = vrot.slane %v239, %v1842
    %v1844 = vmul.f32 %v1843, %v1824
    %v1845 = vmul.f32 %v1843, %v1825
    %v1846 = vmul.f32 %v1844, %v1838
    %v1847 = vmul.f32 %v1845, %v1839
    %v1848 = vlaneseq
    %v1849 = vshrl.u32 %v1848, 7
    %v1850 = vsub.s32 5, %v1849
    %v1851 = vrot.slane %v239, %v1850
    %v1852 = vadd.f32 %v1846, %v1851
    %v1853 = vadd.f32 %v1847, %v1851
    %v1854 = vld [vmem:[#allocation2] sm:$0xff]
    %v1855 = vld [vmem:[#allocation2 + $0x8] sm:$0xff]
    %v1856 = vld [vmem:[#allocation2 + $0x10] sm:$0xff]
    %v1857 = vld [vmem:[#allocation2 + $0x18] sm:$0xff]
    %v1858 = vlaneseq
    %v1859 = vshrl.u32 %v1858, 7
    %v1860 = vsub.s32 0, %v1859
    %v1861 = vrot.slane %v239, %v1860
    %v1863 = vsel %vm56, %v1852, 0
    %v1866 = vsel %vm56, %v1853, 0
    %1868 = vmatprep.subr.mxu0 0.0
    %1869 = vmatpush1.msra.mxu0 %v1854
    %1870 = vmatprep.subr.mxu0 0.0
    %1871 = vmatpush1.msra.mxu0 %v1855
    %1872 = vmatprep.subr.mxu0 0.0
    %1873 = vmatpush1.msra.mxu0 %v1856
    %1874 = vmatprep.subr.mxu0 0.0
    %1875 = vmatpush1.msra.mxu0 %v1857
    %1876 = vmatprep.subr.mxu0 0.0
    %1877 = vmatpush1.msra.mxu0 0.0
    %1878 = vmatprep.subr.mxu0 0.0
    %1879 = vmatpush1.msra.mxu0 0.0
    %1880 = vmatprep.subr.mxu0 0.0
    %1881 = vmatpush1.msra.mxu0 0.0
    %1882 = vmatprep.subr.mxu0 0.0
    %1883 = vmatpush1.msra.mxu0 0.0
    %1884 = vmatprep.subr.mxu0 0.0
    %1885 = vmatpush1.msra.mxu0 0.0
    %1886 = vmatprep.subr.mxu0 0.0
    %1887 = vmatpush1.msra.mxu0 0.0
    %1888 = vmatprep.subr.mxu0 0.0
    %1889 = vmatpush1.msra.mxu0 0.0
    %1890 = vmatprep.subr.mxu0 0.0
    %1891 = vmatpush1.msra.mxu0 0.0
    %1892 = vmatprep.subr.mxu0 0.0
    %1893 = vmatpush1.msra.mxu0 0.0
    %1894 = vmatprep.subr.mxu0 0.0
    %1895 = vmatpush1.msra.mxu0 0.0
    %1896 = vmatprep.subr.mxu0 0.0
    %1897 = vmatpush1.msra.mxu0 0.0
    %1898 = vmatprep.subr.mxu0 0.0
    %1899 = vmatpush1.msra.mxu0 0.0
    %1900 = vmatprep.subr.mxu0 0.0
    %1901 = vmatpush1.msra.mxu0 0.0
    %1902 = vmatprep.subr.mxu0 0.0
    %1903 = vmatpush1.msra.mxu0 0.0
    %1904 = vmatprep.subr.mxu0 0.0
    %1905 = vmatpush1.msra.mxu0 0.0
    %1906 = vmatprep.subr.mxu0 0.0
    %1907 = vmatpush1.msra.mxu0 0.0
    %1908 = vmatprep.subr.mxu0 0.0
    %1909 = vmatpush1.msra.mxu0 0.0
    %1910 = vmatprep.subr.mxu0 0.0
    %1911 = vmatpush1.msra.mxu0 0.0
    %1912 = vmatprep.subr.mxu0 0.0
    %1913 = vmatpush1.msra.mxu0 0.0
    %1914 = vmatprep.subr.mxu0 0.0
    %1915 = vmatpush1.msra.mxu0 0.0
    %1916 = vmatprep.subr.mxu0 0.0
    %1917 = vmatpush1.msra.mxu0 0.0
    %1918 = vmatprep.subr.mxu0 0.0
    %1919 = vmatpush1.msra.mxu0 0.0
    %1920 = vmatprep.subr.mxu0 0.0
    %1921 = vmatpush1.msra.mxu0 0.0
    %1922 = vmatprep.subr.mxu0 0.0
    %1923 = vmatpush1.msra.mxu0 0.0
    %1924 = vmatprep.subr.mxu0 0.0
    %1925 = vmatpush1.msra.mxu0 0.0
    %1926 = vmatprep.subr.mxu0 0.0
    %1927 = vmatpush1.msra.mxu0 0.0
    %1928 = vmatprep.subr.mxu0 0.0
    %1929 = vmatpush1.msra.mxu0 0.0
    %1930 = vmatprep.subr.mxu0 0.0
    %1931 = vmatpush1.msra.mxu0 0.0
    %1932 = vmatprep.mubr.f32.mxu0 0.0
    %1933 = vmatmul.mubr.f32.gmra.mrb[0].mxu0 %v1863
    %v1934 = vpop.f32.mrb[0].mxu0
    %v1935 = vadd.f32 %v1861, %v1934
    %v1936 = vpop.f32.mrb[0].mxu0
    %1937 = vmatprep.mubr.f32.mxu0 0.0
    %1938 = vmatmul.mubr.f32.gmra.mrb[0].mxu0 %v1866
    %v1939 = vpop.f32.mrb[0].mxu0
    %v1940 = vadd.f32 %v1861, %v1939
    %v1941 = vpop.f32.mrb[0].mxu0
    %1942 = vdwg.mxu0
    %v1943 = vmax.f32 %v1935, 0.0
    %v1944 = vmax.f32 %v1940, 0.0
    %v1945 = vld [vmem:[#allocation2 + $0x20] sm:$0xff]
    %v1946 = vld [vmem:[#allocation2 + $0x28] sm:$0xff]
    %v1947 = vld [vmem:[#allocation2 + $0x30] sm:$0xff]
    %v1948 = vld [vmem:[#allocation2 + $0x38] sm:$0xff]
    %v1949 = vld [vmem:[#allocation2 + $0x40] sm:$0xff]
    %v1950 = vld [vmem:[#allocation2 + $0x48] sm:$0xff]
    %v1951 = vld [vmem:[#allocation2 + $0x50] sm:$0xff]
    %v1952 = vld [vmem:[#allocation2 + $0x58] sm:$0xff]
    %v1953 = vlaneseq
    %v1954 = vshrl.u32 %v1953, 7
    %v1955 = vsub.s32 1, %v1954
    %v1956 = vrot.slane %v239, %v1955
    %vm1957 = vcmask 523264
    %v1959 = vsel %vm1957, %v1943, 0
    %v1962 = vsel %vm1957, %v1944, 0
    %1964 = vmatprep.subr.mxu0 0.0
    %1965 = vmatpush1.msra.mxu0 %v1945
    %1966 = vmatprep.subr.mxu0 0.0
    %1967 = vmatpush1.msra.mxu0 %v1946
    %1968 = vmatprep.subr.mxu0 0.0
    %1969 = vmatpush1.msra.mxu0 %v1947
    %1970 = vmatprep.subr.mxu0 0.0
    %1971 = vmatpush1.msra.mxu0 %v1948
    %1972 = vmatprep.subr.mxu0 0.0
    %1973 = vmatpush1.msra.mxu0 %v1949
    %1974 = vmatprep.subr.mxu0 0.0
    %1975 = vmatpush1.msra.mxu0 %v1950
    %1976 = vmatprep.subr.mxu0 0.0
    %1977 = vmatpush1.msra.mxu0 %v1951
    %1978 = vmatprep.subr.mxu0 0.0
    %1979 = vmatpush1.msra.mxu0 %v1952
    %1980 = vmatprep.subr.mxu0 0.0
    %1981 = vmatpush1.msra.mxu0 0.0
    %1982 = vmatprep.subr.mxu0 0.0
    %1983 = vmatpush1.msra.mxu0 0.0
    %1984 = vmatprep.subr.mxu0 0.0
    %1985 = vmatpush1.msra.mxu0 0.0
    %1986 = vmatprep.subr.mxu0 0.0
    %1987 = vmatpush1.msra.mxu0 0.0
    %1988 = vmatprep.subr.mxu0 0.0
    %1989 = vmatpush1.msra.mxu0 0.0
    %1990 = vmatprep.subr.mxu0 0.0
    %1991 = vmatpush1.msra.mxu0 0.0
    %1992 = vmatprep.subr.mxu0 0.0
    %1993 = vmatpush1.msra.mxu0 0.0
    %1994 = vmatprep.subr.mxu0 0.0
    %1995 = vmatpush1.msra.mxu0 0.0
    %1996 = vmatprep.subr.mxu0 0.0
    %1997 = vmatpush1.msra.mxu0 0.0
    %1998 = vmatprep.subr.mxu0 0.0
    %1999 = vmatpush1.msra.mxu0 0.0
    %2000 = vmatprep.subr.mxu0 0.0
    %2001 = vmatpush1.msra.mxu0 0.0
    %2002 = vmatprep.subr.mxu0 0.0
    %2003 = vmatpush1.msra.mxu0 0.0
    %2004 = vmatprep.subr.mxu0 0.0
    %2005 = vmatpush1.msra.mxu0 0.0
    %2006 = vmatprep.subr.mxu0 0.0
    %2007 = vmatpush1.msra.mxu0 0.0
    %2008 = vmatprep.subr.mxu0 0.0
    %2009 = vmatpush1.msra.mxu0 0.0
    %2010 = vmatprep.subr.mxu0 0.0
    %2011 = vmatpush1.msra.mxu0 0.0
    %2012 = vmatprep.subr.mxu0 0.0
    %2013 = vmatpush1.msra.mxu0 0.0
    %2014 = vmatprep.subr.mxu0 0.0
    %2015 = vmatpush1.msra.mxu0 0.0
    %2016 = vmatprep.subr.mxu0 0.0
    %2017 = vmatpush1.msra.mxu0 0.0
    %2018 = vmatprep.subr.mxu0 0.0
    %2019 = vmatpush1.msra.mxu0 0.0
    %2020 = vmatprep.subr.mxu0 0.0
    %2021 = vmatpush1.msra.mxu0 0.0
    %2022 = vmatprep.subr.mxu0 0.0
    %2023 = vmatpush1.msra.mxu0 0.0
    %2024 = vmatprep.subr.mxu0 0.0
    %2025 = vmatpush1.msra.mxu0 0.0
    %2026 = vmatprep.subr.mxu0 0.0
    %2027 = vmatpush1.msra.mxu0 0.0
    %2028 = vmatprep.mubr.f32.mxu0 0.0
    %2029 = vmatmul.mubr.f32.gmra.mrb[0].mxu0 %v1959
    %v2030 = vpop.f32.mrb[0].mxu0
    %v2031 = vadd.f32 %v1956, %v2030
    %v2032 = vpop.f32.mrb[0].mxu0
    %2033 = vmatprep.mubr.f32.mxu0 0.0
    %2034 = vmatmul.mubr.f32.gmra.mrb[0].mxu0 %v1962
    %v2035 = vpop.f32.mrb[0].mxu0
    %v2036 = vadd.f32 %v1956, %v2035
    %v2037 = vpop.f32.mrb[0].mxu0
    %2038 = vdwg.mxu0
    %v2039 = vadd.f32 %v2031, %v1852
    %v2040 = vadd.f32 %v2036, %v1853
    %v2041 = vsel %vm56, %v2039, 0.0
    %2042 = vadd.xlane.f32.xlu0 %v2041
    %v2043 = vpop.xlane.xlu0 %2042
    %v2044 = vsel %vm56, %v2040, 0.0
    %2045 = vadd.xlane.f32.xlu0 %v2044
    %v2046 = vpop.xlane.xlu0 %2045
    %v2047 = vmul.f32 %v2043, %v1015
    %v2048 = vmul.f32 %v2046, %v1015
    %v2049 = vsub.f32 %v2039, %v2047
    %v2050 = vsub.f32 %v2040, %v2048
    %v2051 = vmul.f32 %v2049, %v2049
    %v2052 = vmul.f32 %v2050, %v2050
    %v2053 = vsel %vm56, %v2051, 0.0
    %2054 = vadd.xlane.f32.xlu0 %v2053
    %v2055 = vpop.xlane.xlu0 %2054
    %v2056 = vsel %vm56, %v2052, 0.0
    %2057 = vadd.xlane.f32.xlu0 %v2056
    %v2058 = vpop.xlane.xlu0 %2057
    %v2059 = vmul.f32 %v2055, 0.032258064
    %v2060 = vmul.f32 %v2058, 0.032258064
    %v2061 = vadd.f32 %v2059, 1e-12
    %v2062 = vadd.f32 %v2060, 1e-12
    %v2063 = vrsqrt.pop %v2061
    %v2064 = vrsqrt.pop %v2062
    %v2065 = vlaneseq
    %v2066 = vshrl.u32 %v2065, 7
    %v2067 = vsub.s32 6, %v2066
    %v2068 = vrot.slane %v239, %v2067
    %v2069 = vmul.f32 %v2068, %v2049
    %v2070 = vmul.f32 %v2068, %v2050
    %v2071 = vmul.f32 %v2069, %v2063
    %v2072 = vmul.f32 %v2070, %v2064
    %v2073 = vlaneseq
    %v2074 = vshrl.u32 %v2073, 7
    %v2075 = vsub.s32 7, %v2074
    %v2076 = vrot.slane %v239, %v2075
    %v2077 = vadd.f32 %v2071, %v2076
    %v2078 = vadd.f32 %v2072, %v2076
    %2079 = vst.msk [vmem:[#allocation5] sm:$0xff] %vm56, %v2077
    %2080 = vst.msk [vmem:[#allocation5 + $0x8] sm:$0xff] %vm56, %v2078
    // Predicated region
    $region22: #{decoder_block.1} parent=1 // pred_check
      _
    $region23: #{decoder_block.1} parent=1 // pred_check_branch
      %2082 = sbr.rel (0) target = $region25
    $region24: #{decoder_block.1} parent=1 // pred_region
      %s2084 = ssub.s32 256, 256
      %2085 = vsyncadd [#allocation4], %s2084
      %s2086 = sshll.u32 [#allocation5], 4
      %s2087 = int_to_ptr.vmem [resolvable:$true] %s2086
      %2092 = dma.vmem_to_hbm [thread:$0]  %s2087, 256, %s4, [#allocation4], 128, 128, 8
    $region25: #{decoder_block.1} parent=1 // pred_fallthru
      _
    // Predicated region
    $region26: #{decoder_block.1} parent=1 // pred_check
      _
    $region27: #{decoder_block.1} parent=1 // pred_check_branch
      %2094 = sbr.rel (0) target = $region29
    $region28: #{decoder_block.1} parent=1 // pred_region
      %2095 = dma.done [#allocation4], 256
    $region29: #{decoder_block.1} parent=1 // pred_fallthru
      _
    %2096 = vsyncpa [#allocation3], 1
    %2097 = vsyncpa [#allocation4], 1

</llo_original>
